<compile_context>
chip_gen: v5e
topology: v5e:2x2
jax: 0.10.0
libtpu: 0.0.40
codegen_flags: <defaults>
</compile_context>

<pallas_src>
import functools

import jax
import jax.numpy as jnp
from jax.experimental import pallas as pl
from jax.experimental.pallas import tpu as pltpu


def _mlp_wave_kernel(num_linear, bias_offsets, last_is_reduce, x_ref, *refs):
    """Fused MLP forward in transposed layout.

    refs layout: w_0, w_1, ..., w_{L-1}, b_all_ref, out_ref
      x_ref  : [d_in, tile_n]    (batch on lanes)
      w_0    : [h0, d_in]        f32  (first layer, VPU path)
      w_i    : [h_i, h_{i-1}]    f32 or bf16 (hidden layers, MXU path)
      w_last : [h, 1]            f32 (if last_is_reduce) else [d_out, h]
      b_all  : [sum_out, 1]      f32, all biases concatenated (phi pre-folded)
      out    : [d_out, tile_n]
    """
    w_refs = refs[:num_linear]
    b_ref = refs[num_linear]
    out_ref = refs[num_linear + 1]

    x = x_ref[...].astype(jnp.float32)          # [d_in, tile_n]
    d_in, tile_n = x.shape

    def bias(i):
        off, n = bias_offsets[i]                # static python ints
        return b_ref[off:off + n, :]            # [n, 1] f32

    # ---- first layer: K = d_in (==2) is degenerate for the MXU; do it as
    # broadcast multiply-adds on the VPU instead. -----------------------------
    w0 = w_refs[0][...].astype(jnp.float32)     # [h0, d_in]
    z = jnp.broadcast_to(bias(0), (w0.shape[0], tile_n))
    for k in range(d_in):
        z = z + w0[:, k:k + 1] * x[k:k + 1, :]  # [h,1]*[1,tile_n] -> [h,tile_n]
    a = jnp.sin(z)                              # phi already folded into bias(0)

    # ---- hidden layers: [h,h] @ [h, tile_n] on the MXU (N = tile_n is large).
    # WaveAct amplitude R is already folded into these weights.
    for i in range(1, num_linear - 1):
        w = w_refs[i][...]                      # f32 or bf16
        zi = jnp.dot(w, a.astype(w.dtype), preferred_element_type=jnp.float32)
        a = jnp.sin(zi + bias(i))

    # ---- final linear (no activation) ---------------------------------------
    if last_is_reduce:
        # d_out == 1: avoid an M=1 MXU push; multiply by (h,1) column and
        # reduce over the sublane axis (XLU slot is otherwise idle).
        w_last = w_refs[-1][...].astype(jnp.float32)        # [h, 1]
        out = jnp.sum(w_last * a, axis=0, keepdims=True)
        out = out + bias(num_linear - 1)
    else:
        w = w_refs[-1][...]
        out = jnp.dot(w, a.astype(w.dtype), preferred_element_type=jnp.float32)
        out = out + bias(num_linear - 1)

    out_ref[...] = out.astype(out_ref.dtype)


def nn_forward(x, weights, biases, wave, *, tile_n=1024, mxu_bf16=True):
    """Pallas forward of NN(layers) (forward pass only).

    x       : [N, d_in] float32
    weights : list of (out, in) arrays (PyTorch nn.Linear layout)
    biases  : list of (out,) arrays
    wave    : (2,) = [w1, w2] of the single shared WaveAct
    """
    N, d_in = x.shape
    num_linear = len(weights)
    assert num_linear >= 2, "kernel assumes >= 2 linear layers (spec: len(layers) >= 3)"
    d_out = weights[-1].shape[0]
    last_is_reduce = (d_out == 1)

    # ---- tile / grid selection ----------------------------------------------
    assert tile_n % 128 == 0, "tile_n must be a multiple of 128 lanes"
    tile_n = max(128, min(tile_n, pl.cdiv(N, 128) * 128))
    n_pad = pl.cdiv(N, tile_n) * tile_n          # pad instead of tile_n = N fallback
    # NOTE: for very large tile_n (tens of thousands) pass
    # pltpu.CompilerParams(vmem_limit_bytes=...) and re-derive for v7x (64 MiB).

    # ---- fold WaveAct into the parameters (exact rewrite, done once) --------
    #   w1*sin(z) + w2*cos(z) == R*sin(z + phi), R = sqrt(w1^2+w2^2),
    #   phi = atan2(w2, w1).  phi -> bias of every activated layer,
    #   R -> weights of every subsequent layer.
    amp = jnp.sqrt(wave[0] ** 2 + wave[1] ** 2)
    phi = jnp.arctan2(wave[1], wave[0])

    w_args, bias_cols, bias_offsets = [], [], []
    off = 0
    for i, (w, b) in enumerate(zip(weights, biases)):
        w = w.astype(jnp.float32)
        b = b.astype(jnp.float32)
        if i > 0:
            w = amp * w                       # fold WaveAct amplitude
        if i < num_linear - 1:
            b = b + phi                       # fold WaveAct phase
        if i == 0:
            w_args.append(w)                                  # f32, VPU path
        elif i == num_linear - 1 and last_is_reduce:
            w_args.append(w.T)                                # (h, 1) f32, reduce path
        else:
            w_args.append(w.astype(jnp.bfloat16) if mxu_bf16 else w)
        n = b.shape[0]
        bias_offsets.append((off, n))
        bias_cols.append(b.reshape(n, 1))
        off += n
    b_all = jnp.concatenate(bias_cols, axis=0)                # (sum_out, 1)

    # ---- wrapper-side layout plumbing: batch -> lanes ------------------------
    x_t = x.astype(jnp.float32).T                             # [d_in, N]
    if n_pad != N:
        x_t = jnp.pad(x_t, ((0, 0), (0, n_pad - N)))

    in_specs = [pl.BlockSpec((d_in, tile_n), lambda i: (0, i))]
    for w in w_args:
        in_specs.append(pl.BlockSpec(w.shape, lambda i: (0, 0)))
    in_specs.append(pl.BlockSpec(b_all.shape, lambda i: (0, 0)))
    out_specs = pl.BlockSpec((d_out, tile_n), lambda i: (0, i))

    kernel = functools.partial(_mlp_wave_kernel, num_linear,
                               tuple(bias_offsets), last_is_reduce)

    out_t = pl.pallas_call(
        kernel,
        out_shape=jax.ShapeDtypeStruct((d_out, n_pad), jnp.float32),
        grid=(n_pad // tile_n,),
        in_specs=in_specs,
        out_specs=out_specs,
        compiler_params=pltpu.CompilerParams(
            dimension_semantics=("parallel",)),
    )(x_t, *w_args, b_all)

    return out_t[:, :N].T                                     # [N, d_out]


if __name__ == "__main__":
    key = jax.random.PRNGKey(0)

    # NN(layers=[2, 32, 32, 1], nu, rho); nu/rho only affect the loss, not forward.
    # TODO(synk): lossR/lossIC/lossBC (autograd residual losses) are not part of
    # the forward pass and are not translated here.
    layers = [2, 32, 32, 1]
    N = 512
    # tile_n = N/2 -> grid=(2,) shards across v7x's two TensorCores; on
    # single-TC v5e/v6e it only costs one extra ~0.35us pipeline step.
    TILE_N = 256

    keys = jax.random.split(key, len(layers))
    weights, biases = [], []
    for i in range(len(layers) - 1):
        fan_in, fan_out = layers[i], layers[i + 1]
        # xavier_normal_: std = sqrt(2 / (fan_in + fan_out)); bias = 0
        std = (2.0 / (fan_in + fan_out)) ** 0.5
        w = jax.random.normal(keys[i], (fan_out, fan_in), dtype=jnp.float32) * std
        weights.append(w)                      # PyTorch layout: (out, in)
        biases.append(jnp.zeros((fan_out,), jnp.float32))
    wave = jnp.ones((2,), jnp.float32)         # WaveAct w1 = w2 = 1

    x = jax.random.normal(keys[-1], (N, layers[0]), dtype=jnp.float32)

    out_f32 = nn_forward(x, weights, biases, wave, tile_n=TILE_N, mxu_bf16=False)
    out_bf16 = nn_forward(x, weights, biases, wave, tile_n=TILE_N, mxu_bf16=True)
    out_f32, out_bf16 = jax.block_until_ready((out_f32, out_bf16))

    # pure-JAX reference (original w1*sin + w2*cos form)
    a = x
    for i in range(len(weights) - 1):
        z = a @ weights[i].T + biases[i]
        a = wave[0] * jnp.sin(z) + wave[1] * jnp.cos(z)
    ref = a @ weights[-1].T + biases[-1].reshape(1, -1)

    assert out_f32.shape == (N, layers[-1])
    assert jnp.allclose(out_f32, ref, atol=1e-4), (
        "f32 Pallas output mismatch vs reference: max abs diff "
        f"{float(jnp.max(jnp.abs(out_f32 - ref)))}")
    assert jnp.allclose(out_bf16, ref, atol=5e-2), (
        "bf16-MXU Pallas output mismatch vs reference: max abs diff "
        f"{float(jnp.max(jnp.abs(out_bf16 - ref)))}")

    print("KERNEL_OK")
</pallas_src>

<mosaic_0001>
module attributes {stable_mosaic.version = 11 : i64} {
  func.func @_mlp_wave_kernel(%arg0: i32, %arg1: memref<2x256xf32, #tpu.memory_space<vmem>>, %arg2: memref<32x2xf32, #tpu.memory_space<vmem>>, %arg3: memref<32x32xf32, #tpu.memory_space<vmem>>, %arg4: memref<32x1xf32, #tpu.memory_space<vmem>>, %arg5: memref<65x1xf32, #tpu.memory_space<vmem>>, %arg6: memref<1x256xf32, #tpu.memory_space<vmem>>) attributes {dimension_semantics = [#tpu.dimension_semantics<parallel>], iteration_bounds = array<i64: 2>, scalar_prefetch = 0 : i64, scratch_operands = 0 : i64, tpu.core_type = #tpu.core_type<tc>, window_params = [{transform_indices = @transform_0, window_bounds = array<i64: 2, 256>}, {pipeline_mode = #tpu.pipeline_mode<synchronous>, transform_indices = @transform_1, window_bounds = array<i64: 32, 2>}, {pipeline_mode = #tpu.pipeline_mode<synchronous>, transform_indices = @transform_2, window_bounds = array<i64: 32, 32>}, {pipeline_mode = #tpu.pipeline_mode<synchronous>, transform_indices = @transform_3, window_bounds = array<i64: 32, 1>}, {pipeline_mode = #tpu.pipeline_mode<synchronous>, transform_indices = @transform_4, window_bounds = array<i64: 65, 1>}, {transform_indices = @transform_5, window_bounds = array<i64: 1, 256>}]} {
    %c0 = arith.constant 0 : index
    %c0_0 = arith.constant 0 : index
    %0 = vector.load %arg1[%c0, %c0_0] : memref<2x256xf32, #tpu.memory_space<vmem>>, vector<2x256xf32>
    %c0_1 = arith.constant 0 : index
    %c0_2 = arith.constant 0 : index
    %1 = vector.load %arg2[%c0_1, %c0_2] : memref<32x2xf32, #tpu.memory_space<vmem>>, vector<32x2xf32>
    %c0_3 = arith.constant 0 : index
    %c0_4 = arith.constant 0 : index
    %2 = vector.load %arg5[%c0_3, %c0_4] : memref<65x1xf32, #tpu.memory_space<vmem>>, vector<32x1xf32>
    %3 = vector.shape_cast %2 : vector<32x1xf32> to vector<32x1xf32>
    %4 = vector.broadcast %3 : vector<32x1xf32> to vector<32x256xf32>
    %5 = vector.extract_strided_slice %1 {offsets = [0, 0], sizes = [32, 1], strides = [1, 1]} : vector<32x2xf32> to vector<32x1xf32>
    %6 = vector.extract_strided_slice %0 {offsets = [0, 0], sizes = [1, 256], strides = [1, 1]} : vector<2x256xf32> to vector<1x256xf32>
    %7 = vector.broadcast %5 : vector<32x1xf32> to vector<32x256xf32>
    %8 = vector.broadcast %6 : vector<1x256xf32> to vector<32x256xf32>
    %9 = arith.mulf %7, %8 : vector<32x256xf32>
    %10 = arith.addf %4, %9 : vector<32x256xf32>
    %11 = vector.extract_strided_slice %1 {offsets = [0, 1], sizes = [32, 1], strides = [1, 1]} : vector<32x2xf32> to vector<32x1xf32>
    %12 = vector.extract_strided_slice %0 {offsets = [1, 0], sizes = [1, 256], strides = [1, 1]} : vector<2x256xf32> to vector<1x256xf32>
    %13 = vector.broadcast %11 : vector<32x1xf32> to vector<32x256xf32>
    %14 = vector.broadcast %12 : vector<1x256xf32> to vector<32x256xf32>
    %15 = arith.mulf %13, %14 : vector<32x256xf32>
    %16 = arith.addf %10, %15 : vector<32x256xf32>
    %17 = math.sin %16 : vector<32x256xf32>
    %c0_5 = arith.constant 0 : index
    %c0_6 = arith.constant 0 : index
    %18 = vector.load %arg3[%c0_5, %c0_6] : memref<32x32xf32, #tpu.memory_space<vmem>>, vector<32x32xf32>
    %cst = arith.constant dense<0.000000e+00> : vector<32x256xf32>
    %19 = tpu.matmul %18, %17, %cst {dimension_numbers = #tpu.dot_dimension_numbers<[1], [0], [0], [1], [0, 0, 1, 1], [], []>} : vector<32x32xf32>, vector<32x256xf32>, vector<32x256xf32> -> vector<32x256xf32>
    %c32 = arith.constant 32 : index
    %c0_7 = arith.constant 0 : index
    %20 = vector.load %arg5[%c32, %c0_7] : memref<65x1xf32, #tpu.memory_space<vmem>>, vector<32x1xf32>
    %21 = vector.broadcast %20 : vector<32x1xf32> to vector<32x256xf32>
    %22 = arith.addf %19, %21 : vector<32x256xf32>
    %23 = math.sin %22 : vector<32x256xf32>
    %c0_8 = arith.constant 0 : index
    %c0_9 = arith.constant 0 : index
    %24 = vector.load %arg4[%c0_8, %c0_9] : memref<32x1xf32, #tpu.memory_space<vmem>>, vector<32x1xf32>
    %25 = vector.broadcast %24 : vector<32x1xf32> to vector<32x256xf32>
    %26 = arith.mulf %25, %23 : vector<32x256xf32>
    %cst_10 = arith.constant dense<0.000000e+00> : vector<256xf32>
    %27 = vector.multi_reduction <add>, %26, %cst_10 [0] : vector<32x256xf32> to vector<256xf32>
    %28 = vector.shape_cast %27 : vector<256xf32> to vector<1x256xf32>
    %c64 = arith.constant 64 : index
    %c0_11 = arith.constant 0 : index
    %29 = vector.load %arg5[%c64, %c0_11] : memref<65x1xf32, #tpu.memory_space<vmem>>, vector<1x1xf32>
    %30 = vector.broadcast %29 : vector<1x1xf32> to vector<1x256xf32>
    %31 = arith.addf %28, %30 : vector<1x256xf32>
    %c0_12 = arith.constant 0 : index
    %c0_13 = arith.constant 0 : index
    %32 = vector.load %arg6[%c0_12, %c0_13] : memref<1x256xf32, #tpu.memory_space<vmem>>, vector<1x256xf32>
    tpu.vector_store %arg6[%c0_12, %c0_13], %31 {strides = array<i32>} : memref<1x256xf32, #tpu.memory_space<vmem>>, vector<1x256xf32>,
    return
  }
  func.func @transform_0(%arg0: i32) -> (i32, i32) {
    %c0_i32 = arith.constant 0 : i32
    %c0_i32_0 = arith.constant 0 : i32
    return %c0_i32, %arg0 : i32, i32
  }
  func.func @transform_1(%arg0: i32) -> (i32, i32) {
    %c0_i32 = arith.constant 0 : i32
    %c0_i32_0 = arith.constant 0 : i32
    %c0_i32_1 = arith.constant 0 : i32
    return %c0_i32, %c0_i32_0 : i32, i32
  }
  func.func @transform_2(%arg0: i32) -> (i32, i32) {
    %c0_i32 = arith.constant 0 : i32
    %c0_i32_0 = arith.constant 0 : i32
    %c0_i32_1 = arith.constant 0 : i32
    return %c0_i32, %c0_i32_0 : i32, i32
  }
  func.func @transform_3(%arg0: i32) -> (i32, i32) {
    %c0_i32 = arith.constant 0 : i32
    %c0_i32_0 = arith.constant 0 : i32
    %c0_i32_1 = arith.constant 0 : i32
    return %c0_i32, %c0_i32_0 : i32, i32
  }
  func.func @transform_4(%arg0: i32) -> (i32, i32) {
    %c0_i32 = arith.constant 0 : i32
    %c0_i32_0 = arith.constant 0 : i32
    %c0_i32_1 = arith.constant 0 : i32
    return %c0_i32, %c0_i32_0 : i32, i32
  }
  func.func @transform_5(%arg0: i32) -> (i32, i32) {
    %c0_i32 = arith.constant 0 : i32
    %c0_i32_0 = arith.constant 0 : i32
    return %c0_i32, %arg0 : i32, i32
  }
}

</mosaic_0001>

<llo_original>
// kernel: tpu_custom_call.1
$region0: #{tpu_custom_call.1}
  #allocation0 [shape = 'u32[]', space=smem, size = 0x4, offset = 0x4, fixed_abs, tag = 'smem constant byte address 0x4 - core index']
  #allocation1 [shape = 'u32[72,128]{1,0:T(1,128)}', space=vmem, size = 0x9000, scoped, tag = 'internal scratch']
  %s0 = inlined_call_operand.vmem [shape: f32[2,512], index: 0, kind: input, shape index: {}]
  %s1 = inlined_call_operand.vmem [shape: f32[32,2], index: 1, kind: input, shape index: {}]
  %s2 = inlined_call_operand.vmem [shape: f32[32,32], index: 2, kind: input, shape index: {}]
  %s3 = inlined_call_operand.vmem [shape: f32[32,1], index: 3, kind: input, shape index: {}]
  %s4 = inlined_call_operand.vmem [shape: f32[65,1], index: 4, kind: input, shape index: {}]
  %s5 = inlined_call_operand.hbm [shape: f32[1,512], index: 5, kind: output, shape index: {}]
  %s6 = sld [smem:[#allocation0]]
  $region53: #{tpu_custom_call.1} parent=0
    _
  %s8 = ssub.s32 1, %s6
  %s9 = scalar_select 0, %s8, %s6
  $region1: #{tpu_custom_call.1} parent=0
    #allocation2 [shape = 'u8[2048]{0}', space=vmem, size = 0x800, scoped, tag = 'output window, operand 0']
    #allocation3 [shape = 's32[2]{0}', space=sflag, size = 0x8, scoped, tag = 'scoped memory for tpu_custom_call.1']
    %10 = vsyncpa [#allocation3], 0
    %s11 = scalar_lea.sflag [#allocation3], 1
    %12 = vsyncpa %s11, 0
    loop: start=0, step=1, limit=4
    $region2: #{tpu_custom_call.1} parent=1 // loop_pre_header
      _
    $region3: #{tpu_custom_call.1} parent=1 // loop_header
      %s14 = sphi 0, %s18
      %p15 = scmp.ge.s32.totalorder %s14, 4
      %s24 = sphi 0, %s26
      %s27 = sphi 0, %s24
      %s28 = sphi 0, %s27
      %s44 = sphi 0, %s28
      %s48 = sphi 0, %s48
      %s50 = sphi 0, %s48
      %s51 = sphi 0, %s50
      %s65 = sphi 0, %s51
      %s69 = sphi 0, %s69
      %s71 = sphi 0, %s69
      %s72 = sphi 0, %s71
      %s86 = sphi 0, %s72
      %s90 = sphi 0, %s90
      %s92 = sphi 0, %s90
      %s93 = sphi 0, %s92
      %s107 = sphi 0, %s93
      %s111 = sphi 0, %s111
      %s113 = sphi 0, %s111
      %s114 = sphi 0, %s113
      %s128 = sphi 0, %s114
      %s134 = sphi 0, %s136
      %s137 = sphi 0, %s134
      %s138 = sphi 0, %s137
      %s154 = sphi 0, %s138
    $region4: #{tpu_custom_call.1} parent=1 // loop_header_branch
      %17 = sbr.rel (%p15) target = $region8
    $region5: #{tpu_custom_call.1} parent=1 // loop_body
      %s19 = ssub.s32 %s14, 1
      %s20 = ssub.s32 %s14, 2
      %s21 = sadd.s32 %s14, 1
      %s22 = ssub.s32 %s14, %s21
      %p23 = scmp.eq.s32.totalorder %s22, 0
      %s25 = sadd.s32 %s24, 1
      %s26 = scalar_select %p23, %s24, %s25
      %p29 = pneg %p23
      %p30 = scmp.eq.s32.totalorder %s14, 1
      %p31 = por %p29, %p30
      %p32 = scmp.ne.s32.totalorder %s24, %s27
      %p33 = scmp.eq.s32.totalorder %s14, 0
      %p34 = por %p32, %p33
      %p35 = scmp.ne.s32.totalorder %s24, %s27
      %p36 = scmp.eq.s32.totalorder %s19, 1
      %p37 = por %p35, %p36
      %p38 = scmp.ne.s32.totalorder %s27, %s28
      %p39 = scmp.eq.s32.totalorder %s19, 0
      %p40 = por %p38, %p39
      %p41 = scmp.ne.s32.totalorder %s27, %s28
      %p42 = scmp.eq.s32.totalorder %s20, 1
      %p43 = por %p41, %p42
      %p45 = scmp.ne.s32.totalorder %s28, %s44
      %p46 = scmp.eq.s32.totalorder %s20, 0
      %p47 = por %p45, %p46
      %s49 = sadd.s32 %s48, 1
      %p52 = scmp.eq.s32.totalorder %s14, 1
      %p53 = scmp.ne.s32.totalorder %s48, %s50
      %p54 = scmp.eq.s32.totalorder %s14, 0
      %p55 = por %p53, %p54
      %p56 = scmp.ne.s32.totalorder %s48, %s50
      %p57 = scmp.eq.s32.totalorder %s19, 1
      %p58 = por %p56, %p57
      %p59 = scmp.ne.s32.totalorder %s50, %s51
      %p60 = scmp.eq.s32.totalorder %s19, 0
      %p61 = por %p59, %p60
      %p62 = scmp.ne.s32.totalorder %s50, %s51
      %p63 = scmp.eq.s32.totalorder %s20, 1
      %p64 = por %p62, %p63
      %p66 = scmp.ne.s32.totalorder %s51, %s65
      %p67 = scmp.eq.s32.totalorder %s20, 0
      %p68 = por %p66, %p67
      %s70 = sadd.s32 %s69, 1
      %p73 = scmp.eq.s32.totalorder %s14, 1
      %p74 = scmp.ne.s32.totalorder %s69, %s71
      %p75 = scmp.eq.s32.totalorder %s14, 0
      %p76 = por %p74, %p75
      %p77 = scmp.ne.s32.totalorder %s69, %s71
      %p78 = scmp.eq.s32.totalorder %s19, 1
      %p79 = por %p77, %p78
      %p80 = scmp.ne.s32.totalorder %s71, %s72
      %p81 = scmp.eq.s32.totalorder %s19, 0
      %p82 = por %p80, %p81
      %p83 = scmp.ne.s32.totalorder %s71, %s72
      %p84 = scmp.eq.s32.totalorder %s20, 1
      %p85 = por %p83, %p84
      %p87 = scmp.ne.s32.totalorder %s72, %s86
      %p88 = scmp.eq.s32.totalorder %s20, 0
      %p89 = por %p87, %p88
      %s91 = sadd.s32 %s90, 1
      %p94 = scmp.eq.s32.totalorder %s14, 1
      %p95 = scmp.ne.s32.totalorder %s90, %s92
      %p96 = scmp.eq.s32.totalorder %s14, 0
      %p97 = por %p95, %p96
      %p98 = scmp.ne.s32.totalorder %s90, %s92
      %p99 = scmp.eq.s32.totalorder %s19, 1
      %p100 = por %p98, %p99
      %p101 = scmp.ne.s32.totalorder %s92, %s93
      %p102 = scmp.eq.s32.totalorder %s19, 0
      %p103 = por %p101, %p102
      %p104 = scmp.ne.s32.totalorder %s92, %s93
      %p105 = scmp.eq.s32.totalorder %s20, 1
      %p106 = por %p104, %p105
      %p108 = scmp.ne.s32.totalorder %s93, %s107
      %p109 = scmp.eq.s32.totalorder %s20, 0
      %p110 = por %p108, %p109
      %s112 = sadd.s32 %s111, 1
      %p115 = scmp.eq.s32.totalorder %s14, 1
      %p116 = scmp.ne.s32.totalorder %s111, %s113
      %p117 = scmp.eq.s32.totalorder %s14, 0
      %p118 = por %p116, %p117
      %p119 = scmp.ne.s32.totalorder %s111, %s113
      %p120 = scmp.eq.s32.totalorder %s19, 1
      %p121 = por %p119, %p120
      %p122 = scmp.ne.s32.totalorder %s113, %s114
      %p123 = scmp.eq.s32.totalorder %s19, 0
      %p124 = por %p122, %p123
      %p125 = scmp.ne.s32.totalorder %s113, %s114
      %p126 = scmp.eq.s32.totalorder %s20, 1
      %p127 = por %p125, %p126
      %p129 = scmp.ne.s32.totalorder %s114, %s128
      %p130 = scmp.eq.s32.totalorder %s20, 0
      %p131 = por %p129, %p130
      %s132 = ssub.s32 %s14, %s21
      %p133 = scmp.eq.s32.totalorder %s132, 0
      %s135 = sadd.s32 %s134, 1
      %s136 = scalar_select %p133, %s134, %s135
      %p139 = pneg %p133
      %p140 = scmp.eq.s32.totalorder %s14, 1
      %p141 = por %p139, %p140
      %p142 = scmp.ne.s32.totalorder %s134, %s137
      %p143 = scmp.eq.s32.totalorder %s14, 0
      %p144 = por %p142, %p143
      %p145 = scmp.ne.s32.totalorder %s134, %s137
      %p146 = scmp.eq.s32.totalorder %s19, 1
      %p147 = por %p145, %p146
      %p148 = scmp.ne.s32.totalorder %s137, %s138
      %p149 = scmp.eq.s32.totalorder %s19, 0
      %p150 = por %p148, %p149
      %p151 = scmp.ne.s32.totalorder %s137, %s138
      %p152 = scmp.eq.s32.totalorder %s20, 1
      %p153 = por %p151, %p152
      %p155 = scmp.ne.s32.totalorder %s138, %s154
      %p156 = scmp.eq.s32.totalorder %s20, 0
      %p157 = por %p155, %p156
      %p158 = scmp.le.s32.totalorder 1, %s14
      %p159 = scmp.lt.s32.totalorder %s14, 3
      %p160 = pnand %p158, %p159
      %p161 = pneg %p160
      // Predicated region
      $region9: #{tpu_custom_call.1} parent=5 // pred_check
        _
      $region10: #{tpu_custom_call.1} parent=5 // pred_check_branch
        %163 = sbr.rel (%p160) target = $region12
      $region11: #{tpu_custom_call.1} parent=5 // pred_region
        %s164 = ssub.s32 %s14, 1
        // Predicated region
        $region13: #{tpu_custom_call.1} parent=11 // pred_check
          %p165 = pneg %p61
        $region14: #{tpu_custom_call.1} parent=11 // pred_check_branch
          %167 = sbr.rel (%p165) target = $region16
        $region15: #{tpu_custom_call.1} parent=11 // pred_region
          _
        $region16: #{tpu_custom_call.1} parent=11 // pred_fallthru
          _
        // Predicated region
        $region17: #{tpu_custom_call.1} parent=11 // pred_check
          %p168 = pneg %p82
        $region18: #{tpu_custom_call.1} parent=11 // pred_check_branch
          %170 = sbr.rel (%p168) target = $region20
        $region19: #{tpu_custom_call.1} parent=11 // pred_region
          _
        $region20: #{tpu_custom_call.1} parent=11 // pred_fallthru
          _
        // Predicated region
        $region21: #{tpu_custom_call.1} parent=11 // pred_check
          %p171 = pneg %p103
        $region22: #{tpu_custom_call.1} parent=11 // pred_check_branch
          %173 = sbr.rel (%p171) target = $region24
        $region23: #{tpu_custom_call.1} parent=11 // pred_region
          _
        $region24: #{tpu_custom_call.1} parent=11 // pred_fallthru
          _
        // Predicated region
        $region25: #{tpu_custom_call.1} parent=11 // pred_check
          %p174 = pneg %p124
        $region26: #{tpu_custom_call.1} parent=11 // pred_check_branch
          %176 = sbr.rel (%p174) target = $region28
        $region27: #{tpu_custom_call.1} parent=11 // pred_region
          _
        $region28: #{tpu_custom_call.1} parent=11 // pred_fallthru
          _
      $region12: #{tpu_custom_call.1} parent=5 // pred_fallthru
        _
      %p177 = scmp.lt.s32.totalorder %s14, 2
      // Predicated region
      $region29: #{tpu_custom_call.1} parent=5 // pred_check
        %p178 = pneg %p177
      $region30: #{tpu_custom_call.1} parent=5 // pred_check_branch
        %180 = sbr.rel (%p178) target = $region32
      $region31: #{tpu_custom_call.1} parent=5 // pred_region
        // Predicated region
        $region33: #{tpu_custom_call.1} parent=31 // pred_check
          %p181 = pneg %p34
        $region34: #{tpu_custom_call.1} parent=31 // pred_check_branch
          %183 = sbr.rel (%p181) target = $region36
        $region35: #{tpu_custom_call.1} parent=31 // pred_region
          %s184 = smul.u32 2, %s14
          %p185 = scmp.lt.s32.totalorder %s184, 3
          %s186 = scalar_select %p185, %s184, 3
          %s187 = smul.addr %s186, 2
          %s188 = scalar_lea.vmem %s0, %s187
          %s189 = smul.u32 2, %s14
        $region36: #{tpu_custom_call.1} parent=31 // pred_fallthru
          _
      $region32: #{tpu_custom_call.1} parent=5 // pred_fallthru
        _
      %p190 = scmp.le.s32.totalorder 1, %s14
      %p191 = scmp.lt.s32.totalorder %s14, 3
      %p192 = pnand %p190, %p191
      %p193 = pneg %p192
      // Predicated region
      $region37: #{tpu_custom_call.1} parent=5 // pred_check
        _
      $region38: #{tpu_custom_call.1} parent=5 // pred_check_branch
        %195 = sbr.rel (%p192) target = $region40
      $region39: #{tpu_custom_call.1} parent=5 // pred_region
        %s196 = ssub.s32 %s14, 1
        %s197 = smul.u32 2, %s19
        %p198 = scmp.lt.s32.totalorder %s197, 3
        %s199 = scalar_select %p198, %s197, 3
        %s200 = smul.addr %s199, 2
        %s201 = scalar_lea.vmem %s0, %s200
        %p202 = pneg %p40
        %p203 = pneg %p37
        %p204 = pneg %p61
        %p205 = pneg %p58
        %p206 = pneg %p82
        %p207 = pneg %p79
        %p208 = pneg %p103
        %p209 = pneg %p100
        %p210 = pneg %p124
        %p211 = pneg %p121
        %p212 = pneg %p150
        %p213 = pneg %p147
        %s214 = sand.u32 %s137, 1
        %s215 = scalar_lea.sflag [#allocation3], %s214
        %s216 = sand.u32 %s137, 1
        %s217 = smul.addr %s216, 2
        %s218 = scalar_lea.vmem [#allocation2], %s217
        %s219 = smul.u32 2, %s19
        %p220 = scmp.lt.s32.totalorder %s219, 3
        %s221 = scalar_select %p220, %s219, 3
        %s222 = smul.addr %s221, 2
        %s223 = scalar_lea.vmem %s0, %s222
        %s224 = smul.u32 2, %s19
        %s225 = smul.u32 2, %s19
        %v226 = vld [vmem:[%s223] sm:$0xf]
        %v227 = vld [vmem:[%s1] sm:$0xff]
        %v228 = vld [vmem:[%s1 + $0x8] sm:$0xff]
        %v229 = vld [vmem:[%s1 + $0x10] sm:$0xff]
        %v230 = vld [vmem:[%s1 + $0x18] sm:$0xff]
        %v231 = vld [vmem:[%s4] sm:$0xff]
        %v232 = vld [vmem:[%s4 + $0x8] sm:$0xff]
        %v233 = vld [vmem:[%s4 + $0x10] sm:$0xff]
        %v234 = vld [vmem:[%s4 + $0x18] sm:$0xff]
        %236 = vset.pattern.permute.xlu0 0
        %237 = vperm.xlu0 %236, %v231
        %v238 = vpop.permute.xlu0 %237
        %241 = vset.pattern.permute.xlu0 0
        %242 = vperm.xlu0 %241, %v232
        %v243 = vpop.permute.xlu0 %242
        %246 = vset.pattern.permute.xlu0 0
        %247 = vperm.xlu0 %246, %v233
        %v248 = vpop.permute.xlu0 %247
        %251 = vset.pattern.permute.xlu0 0
        %252 = vperm.xlu0 %251, %v234
        %v253 = vpop.permute.xlu0 %252
        %256 = vset.pattern.permute.xlu0 0
        %257 = vperm.xlu0 %256, %v227
        %v258 = vpop.permute.xlu0 %257
        %261 = vset.pattern.permute.xlu0 0
        %262 = vperm.xlu0 %261, %v228
        %v263 = vpop.permute.xlu0 %262
        %266 = vset.pattern.permute.xlu0 0
        %267 = vperm.xlu0 %266, %v229
        %v268 = vpop.permute.xlu0 %267
        %271 = vset.pattern.permute.xlu0 0
        %272 = vperm.xlu0 %271, %v230
        %v273 = vpop.permute.xlu0 %272
        %v276 = vperm.slane %v226, 0
        %v277 = vperm.slane %v226, 2
        %v280 = vperm.slane %v276, 0
        %v281 = vperm.slane %v277, 0
        %v282 = vmul.f32 %v258, %v280
        %v283 = vmul.f32 %v258, %v281
        %v284 = vmul.f32 %v263, %v280
        %v285 = vmul.f32 %v263, %v281
        %v286 = vmul.f32 %v268, %v280
        %v287 = vmul.f32 %v268, %v281
        %v288 = vmul.f32 %v273, %v280
        %v289 = vmul.f32 %v273, %v281
        %v290 = vadd.f32 %v238, %v282
        %v291 = vadd.f32 %v238, %v283
        %v292 = vadd.f32 %v243, %v284
        %v293 = vadd.f32 %v243, %v285
        %v294 = vadd.f32 %v248, %v286
        %v295 = vadd.f32 %v248, %v287
        %v296 = vadd.f32 %v253, %v288
        %v297 = vadd.f32 %v253, %v289
        %298 = vset.pattern.permute.xlu0 1
        %299 = vperm.xlu0 %298, %v227
        %v300 = vpop.permute.xlu0 %299
        %302 = vset.pattern.permute.xlu0 1
        %303 = vperm.xlu0 %302, %v228
        %v304 = vpop.permute.xlu0 %303
        %306 = vset.pattern.permute.xlu0 1
        %307 = vperm.xlu0 %306, %v229
        %v308 = vpop.permute.xlu0 %307
        %310 = vset.pattern.permute.xlu0 1
        %311 = vperm.xlu0 %310, %v230
        %v312 = vpop.permute.xlu0 %311
        %v314 = vperm.slane %v226, 1
        %v315 = vperm.slane %v226, 3
        %v318 = vperm.slane %v314, 1
        %v319 = vperm.slane %v315, 1
        %v320 = vmul.f32 %v300, %v318
        %v321 = vmul.f32 %v300, %v319
        %v322 = vmul.f32 %v304, %v318
        %v323 = vmul.f32 %v304, %v319
        %v324 = vmul.f32 %v308, %v318
        %v325 = vmul.f32 %v308, %v319
        %v326 = vmul.f32 %v312, %v318
        %v327 = vmul.f32 %v312, %v319
        %v328 = vadd.f32 %v290, %v320
        %v329 = vadd.f32 %v291, %v321
        %v330 = vadd.f32 %v292, %v322
        %v331 = vadd.f32 %v293, %v323
        %v332 = vadd.f32 %v294, %v324
        %v333 = vadd.f32 %v295, %v325
        %v334 = vadd.f32 %v296, %v326
        %v335 = vadd.f32 %v297, %v327
        %v336 = vand.u32 2147483647, %v328
        %vm337 = vcmp.le.f32.partialorder %v336, 0.7853982
        %vm338 = vcmp.lt.s32.totalorder %v328, 0
        %v339 = vand.u32 %v328, 2139095040
        %v340 = vshrl.u32 %v339, 23
        %v341 = vsub.s32 %v340, 127
        %v342 = vand.u32 2147483647, %v328
        %v343 = vand.u32 %v342, 8388607
        %v344 = vor.u32 %v343, 8388608
        %v345 = vsub.s32 0, %v344
        %v346 = vadd.s32 %v341, 1
        %vm347 = vcmp.gt.s32.totalorder %v346, 0
        %v348 = vsel %vm347, %v346, 0
        %v349 = vshrl.u32 %v348, 5
        %v350 = vand.u32 %v348, 31
        %v351 = vsub.s32 32, %v350
        %v352 = vshrl.u32 683565275, %v351
        %v353 = vshll.u32 683565275, %v350
        %v354 = vshrl.u32 2475754826, %v351
        %v355 = vor.u32 %v353, %v354
        %v356 = vshll.u32 2475754826, %v350
        %v357 = vshrl.u32 2131351028, %v351
        %v358 = vor.u32 %v356, %v357
        %v359 = vshll.u32 2131351028, %v350
        %v360 = vshrl.u32 2102212464, %v351
        %v361 = vor.u32 %v359, %v360
        %v362 = vshll.u32 2102212464, %v350
        %v363 = vshrl.u32 920167782, %v351
        %v364 = vor.u32 %v362, %v363
        %v365 = vshll.u32 920167782, %v350
        %v366 = vshrl.u32 1326507024, %v351
        %v367 = vor.u32 %v365, %v366
        %vm368 = vcmp.lt.s32.totalorder %v349, 1
        %vm369 = vcmp.lt.s32.totalorder %v349, 2
        %vm370 = vcmp.lt.s32.totalorder %v349, 3
        %vm371 = vcmp.lt.s32.totalorder %v349, 4
        %v372 = vsel %vm368, %v352, %v355
        %v373 = vsel %vm371, %v361, 2102212464
        %v374 = vsel %vm370, %v358, %v373
        %v375 = vsel %vm369, %v372, %v374
        %v376 = vsel %vm368, %v355, %v358
        %v377 = vsel %vm371, %v364, 920167782
        %v378 = vsel %vm370, %v361, %v377
        %v379 = vsel %vm369, %v376, %v378
        %v380 = vsel %vm368, %v358, %v361
        %v381 = vsel %vm371, %v367, 1326507024
        %v382 = vsel %vm370, %v364, %v381
        %v383 = vsel %vm369, %v380, %v382
        %v384 = vshll.u32 %v344, 8
        %v385 = vand.u32 %v384, 65535
        %v386 = vshrl.u32 %v384, 16
        %v387 = vand.u32 %v383, 65535
        %v388 = vshrl.u32 %v383, 16
        %v389 = vmul.u32 %v385, %v387
        %v390 = vmul.u32 %v385, %v388
        %v391 = vmul.u32 %v386, %v387
        %v392 = vmul.u32 %v386, %v388
        %v393 = vshll.u32 %v390, 16
        %v394 = vshrl.u32 %v390, 16
        %v395 = vshll.u32 %v391, 16
        %v396 = vshrl.u32 %v391, 16
        %vm397 = vc.u32 %v389, %v393
        %v398 = vsel %vm397, 1, 0
        %v399 = vadd.s32 %v389, %v393
        %v400 = vadd.s32 %v392, %v398
        %vm401 = vc.u32 %v399, %v395
        %v402 = vsel %vm401, 1, 0
        %v403 = vadd.s32 %v399, %v395
        %v404 = vadd.s32 %v400, %v402
        %v405 = vadd.s32 %v404, %v394
        %v406 = vadd.s32 %v405, %v396
        %v407 = vand.u32 %v384, 65535
        %v408 = vshrl.u32 %v384, 16
        %v409 = vand.u32 %v379, 65535
        %v410 = vshrl.u32 %v379, 16
        %v411 = vmul.u32 %v407, %v409
        %v412 = vmul.u32 %v407, %v410
        %v413 = vmul.u32 %v408, %v409
        %v414 = vmul.u32 %v408, %v410
        %v415 = vshll.u32 %v412, 16
        %v416 = vshrl.u32 %v412, 16
        %v417 = vshll.u32 %v413, 16
        %v418 = vshrl.u32 %v413, 16
        %vm419 = vc.u32 %v411, %v415
        %v420 = vsel %vm419, 1, 0
        %v421 = vadd.s32 %v411, %v415
        %v422 = vadd.s32 %v414, %v420
        %vm423 = vc.u32 %v421, %v417
        %v424 = vsel %vm423, 1, 0
        %v425 = vadd.s32 %v421, %v417
        %v426 = vadd.s32 %v422, %v424
        %v427 = vadd.s32 %v426, %v416
        %v428 = vadd.s32 %v427, %v418
        %v429 = vmul.u32 %v384, %v375
        %v430 = vadd.s32 %v406, %v425
        %vm431 = vc.u32 %v406, %v425
        %v432 = vadd.s32 %v428, 1
        %v433 = vsel %vm431, %v432, %v428
        %v434 = vadd.s32 %v429, %v433
        %v435 = vadd.s32 %v434, 536870912
        %v436 = vshrl.u32 %v435, 30
        %v437 = vshll.u32 %v436, 30
        %v438 = vsub.s32 %v434, %v437
        %vm439 = vcmp.lt.s32.totalorder %v438, 0
        %v440 = vsub.s32 0, %v438
        %v441 = vsel %vm439, %v440, %v438
        %v442 = vclz %v441
        %v443 = vsub.s32 %v442, 2
        %vm444 = vcmp.gt.s32.totalorder 0, %v443
        %v445 = vsel %vm444, 0, %v443
        %v446 = vsub.s32 32, %v445
        %v447 = vshll.u32 %v438, %v445
        %v448 = vshrl.u32 %v430, %v446
        %v449 = vor.u32 %v447, %v448
        %v450 = vsub.s32 4294967266, %v445
        %v451 = vadd.s32 %v450, 127
        %v452 = vshll.u32 %v451, 23
        %v453 = vor.u32 4788187, %v452
        %v454 = vand.u32 2147483647, %v453
        %v456 = vcvt.s32.f32 %v449
        %v457 = vmul.f32 %v456, %v454
        %v458 = vxor.u32 %v457, 2147483648
        %v459 = vsel %vm338, %v458, %v457
        %v460 = vsub.s32 4, %v436
        %v461 = vsel %vm338, %v460, %v436
        %v462 = vsel %vm337, %v328, %v459
        %v463 = vsel %vm337, 0, %v461
        %v464 = vmul.f32 %v462, %v462
        %v465 = vmul.f32 %v464, -0.001358992
        %v466 = vadd.f32 %v465, 0.041655596
        %v467 = vmul.f32 %v464, %v466
        %v468 = vadd.f32 %v467, -0.4999988
        %v469 = vmul.f32 %v464, %v468
        %v470 = vadd.f32 1.0, %v469
        %v471 = vmul.f32 %v462, %v462
        %v472 = vmul.f32 %v471, -0.00019511016
        %v473 = vadd.f32 %v472, 0.008332121
        %v474 = vmul.f32 %v471, %v473
        %v475 = vadd.f32 %v474, -0.16666654
        %v476 = vmul.f32 %v471, %v475
        %v477 = vadd.f32 %v476, 1.0
        %v478 = vmul.f32 %v477, %v462
        %vm479 = vweird.f32 %v328
        %v480 = vadd.s32 %v463, 3
        %v481 = vand.u32 %v480, 3
        %vm482 = vcmp.lt.s32.totalorder %v481, 2
        %vm483 = vcmp.eq.s32.totalorder %v481, 0
        %v484 = vxor.u32 %v478, 2147483648
        %v485 = vsel %vm483, %v470, %v484
        %vm486 = vcmp.eq.s32.totalorder %v481, 2
        %v487 = vxor.u32 %v470, 2147483648
        %v488 = vsel %vm486, %v487, %v478
        %v489 = vsel %vm482, %v485, %v488
        %v490 = vsel %vm479, nan, %v489
        %v491 = vand.u32 2147483647, %v329
        %vm492 = vcmp.le.f32.partialorder %v491, 0.7853982
        %vm493 = vcmp.lt.s32.totalorder %v329, 0
        %v494 = vand.u32 %v329, 2139095040
        %v495 = vshrl.u32 %v494, 23
        %v496 = vsub.s32 %v495, 127
        %v497 = vand.u32 2147483647, %v329
        %v498 = vand.u32 %v497, 8388607
        %v499 = vor.u32 %v498, 8388608
        %v500 = vsub.s32 0, %v499
        %v501 = vadd.s32 %v496, 1
        %vm502 = vcmp.gt.s32.totalorder %v501, 0
        %v503 = vsel %vm502, %v501, 0
        %v504 = vshrl.u32 %v503, 5
        %v505 = vand.u32 %v503, 31
        %v506 = vsub.s32 32, %v505
        %v507 = vshrl.u32 683565275, %v506
        %v508 = vshll.u32 683565275, %v505
        %v509 = vshrl.u32 2475754826, %v506
        %v510 = vor.u32 %v508, %v509
        %v511 = vshll.u32 2475754826, %v505
        %v512 = vshrl.u32 2131351028, %v506
        %v513 = vor.u32 %v511, %v512
        %v514 = vshll.u32 2131351028, %v505
        %v515 = vshrl.u32 2102212464, %v506
        %v516 = vor.u32 %v514, %v515
        %v517 = vshll.u32 2102212464, %v505
        %v518 = vshrl.u32 920167782, %v506
        %v519 = vor.u32 %v517, %v518
        %v520 = vshll.u32 920167782, %v505
        %v521 = vshrl.u32 1326507024, %v506
        %v522 = vor.u32 %v520, %v521
        %vm523 = vcmp.lt.s32.totalorder %v504, 1
        %vm524 = vcmp.lt.s32.totalorder %v504, 2
        %vm525 = vcmp.lt.s32.totalorder %v504, 3
        %vm526 = vcmp.lt.s32.totalorder %v504, 4
        %v527 = vsel %vm523, %v507, %v510
        %v528 = vsel %vm526, %v516, 2102212464
        %v529 = vsel %vm525, %v513, %v528
        %v530 = vsel %vm524, %v527, %v529
        %v531 = vsel %vm523, %v510, %v513
        %v532 = vsel %vm526, %v519, 920167782
        %v533 = vsel %vm525, %v516, %v532
        %v534 = vsel %vm524, %v531, %v533
        %v535 = vsel %vm523, %v513, %v516
        %v536 = vsel %vm526, %v522, 1326507024
        %v537 = vsel %vm525, %v519, %v536
        %v538 = vsel %vm524, %v535, %v537
        %v539 = vshll.u32 %v499, 8
        %v540 = vand.u32 %v539, 65535
        %v541 = vshrl.u32 %v539, 16
        %v542 = vand.u32 %v538, 65535
        %v543 = vshrl.u32 %v538, 16
        %v544 = vmul.u32 %v540, %v542
        %v545 = vmul.u32 %v540, %v543
        %v546 = vmul.u32 %v541, %v542
        %v547 = vmul.u32 %v541, %v543
        %v548 = vshll.u32 %v545, 16
        %v549 = vshrl.u32 %v545, 16
        %v550 = vshll.u32 %v546, 16
        %v551 = vshrl.u32 %v546, 16
        %vm552 = vc.u32 %v544, %v548
        %v553 = vsel %vm552, 1, 0
        %v554 = vadd.s32 %v544, %v548
        %v555 = vadd.s32 %v547, %v553
        %vm556 = vc.u32 %v554, %v550
        %v557 = vsel %vm556, 1, 0
        %v558 = vadd.s32 %v554, %v550
        %v559 = vadd.s32 %v555, %v557
        %v560 = vadd.s32 %v559, %v549
        %v561 = vadd.s32 %v560, %v551
        %v562 = vand.u32 %v539, 65535
        %v563 = vshrl.u32 %v539, 16
        %v564 = vand.u32 %v534, 65535
        %v565 = vshrl.u32 %v534, 16
        %v566 = vmul.u32 %v562, %v564
        %v567 = vmul.u32 %v562, %v565
        %v568 = vmul.u32 %v563, %v564
        %v569 = vmul.u32 %v563, %v565
        %v570 = vshll.u32 %v567, 16
        %v571 = vshrl.u32 %v567, 16
        %v572 = vshll.u32 %v568, 16
        %v573 = vshrl.u32 %v568, 16
        %vm574 = vc.u32 %v566, %v570
        %v575 = vsel %vm574, 1, 0
        %v576 = vadd.s32 %v566, %v570
        %v577 = vadd.s32 %v569, %v575
        %vm578 = vc.u32 %v576, %v572
        %v579 = vsel %vm578, 1, 0
        %v580 = vadd.s32 %v576, %v572
        %v581 = vadd.s32 %v577, %v579
        %v582 = vadd.s32 %v581, %v571
        %v583 = vadd.s32 %v582, %v573
        %v584 = vmul.u32 %v539, %v530
        %v585 = vadd.s32 %v561, %v580
        %vm586 = vc.u32 %v561, %v580
        %v587 = vadd.s32 %v583, 1
        %v588 = vsel %vm586, %v587, %v583
        %v589 = vadd.s32 %v584, %v588
        %v590 = vadd.s32 %v589, 536870912
        %v591 = vshrl.u32 %v590, 30
        %v592 = vshll.u32 %v591, 30
        %v593 = vsub.s32 %v589, %v592
        %vm594 = vcmp.lt.s32.totalorder %v593, 0
        %v595 = vsub.s32 0, %v593
        %v596 = vsel %vm594, %v595, %v593
        %v597 = vclz %v596
        %v598 = vsub.s32 %v597, 2
        %vm599 = vcmp.gt.s32.totalorder 0, %v598
        %v600 = vsel %vm599, 0, %v598
        %v601 = vsub.s32 32, %v600
        %v602 = vshll.u32 %v593, %v600
        %v603 = vshrl.u32 %v585, %v601
        %v604 = vor.u32 %v602, %v603
        %v605 = vsub.s32 4294967266, %v600
        %v606 = vadd.s32 %v605, 127
        %v607 = vshll.u32 %v606, 23
        %v608 = vor.u32 4788187, %v607
        %v609 = vand.u32 2147483647, %v608
        %v611 = vcvt.s32.f32 %v604
        %v612 = vmul.f32 %v611, %v609
        %v613 = vxor.u32 %v612, 2147483648
        %v614 = vsel %vm493, %v613, %v612
        %v615 = vsub.s32 4, %v591
        %v616 = vsel %vm493, %v615, %v591
        %v617 = vsel %vm492, %v329, %v614
        %v618 = vsel %vm492, 0, %v616
        %v619 = vmul.f32 %v617, %v617
        %v620 = vmul.f32 %v619, -0.001358992
        %v621 = vadd.f32 %v620, 0.041655596
        %v622 = vmul.f32 %v619, %v621
        %v623 = vadd.f32 %v622, -0.4999988
        %v624 = vmul.f32 %v619, %v623
        %v625 = vadd.f32 1.0, %v624
        %v626 = vmul.f32 %v617, %v617
        %v627 = vmul.f32 %v626, -0.00019511016
        %v628 = vadd.f32 %v627, 0.008332121
        %v629 = vmul.f32 %v626, %v628
        %v630 = vadd.f32 %v629, -0.16666654
        %v631 = vmul.f32 %v626, %v630
        %v632 = vadd.f32 %v631, 1.0
        %v633 = vmul.f32 %v632, %v617
        %vm634 = vweird.f32 %v329
        %v635 = vadd.s32 %v618, 3
        %v636 = vand.u32 %v635, 3
        %vm637 = vcmp.lt.s32.totalorder %v636, 2
        %vm638 = vcmp.eq.s32.totalorder %v636, 0
        %v639 = vxor.u32 %v633, 2147483648
        %v640 = vsel %vm638, %v625, %v639
        %vm641 = vcmp.eq.s32.totalorder %v636, 2
        %v642 = vxor.u32 %v625, 2147483648
        %v643 = vsel %vm641, %v642, %v633
        %v644 = vsel %vm637, %v640, %v643
        %v645 = vsel %vm634, nan, %v644
        %v646 = vand.u32 2147483647, %v330
        %vm647 = vcmp.le.f32.partialorder %v646, 0.7853982
        %vm648 = vcmp.lt.s32.totalorder %v330, 0
        %v649 = vand.u32 %v330, 2139095040
        %v650 = vshrl.u32 %v649, 23
        %v651 = vsub.s32 %v650, 127
        %v652 = vand.u32 2147483647, %v330
        %v653 = vand.u32 %v652, 8388607
        %v654 = vor.u32 %v653, 8388608
        %v655 = vsub.s32 0, %v654
        %v656 = vadd.s32 %v651, 1
        %vm657 = vcmp.gt.s32.totalorder %v656, 0
        %v658 = vsel %vm657, %v656, 0
        %v659 = vshrl.u32 %v658, 5
        %v660 = vand.u32 %v658, 31
        %v661 = vsub.s32 32, %v660
        %v662 = vshrl.u32 683565275, %v661
        %v663 = vshll.u32 683565275, %v660
        %v664 = vshrl.u32 2475754826, %v661
        %v665 = vor.u32 %v663, %v664
        %v666 = vshll.u32 2475754826, %v660
        %v667 = vshrl.u32 2131351028, %v661
        %v668 = vor.u32 %v666, %v667
        %v669 = vshll.u32 2131351028, %v660
        %v670 = vshrl.u32 2102212464, %v661
        %v671 = vor.u32 %v669, %v670
        %v672 = vshll.u32 2102212464, %v660
        %v673 = vshrl.u32 920167782, %v661
        %v674 = vor.u32 %v672, %v673
        %v675 = vshll.u32 920167782, %v660
        %v676 = vshrl.u32 1326507024, %v661
        %v677 = vor.u32 %v675, %v676
        %vm678 = vcmp.lt.s32.totalorder %v659, 1
        %vm679 = vcmp.lt.s32.totalorder %v659, 2
        %vm680 = vcmp.lt.s32.totalorder %v659, 3
        %vm681 = vcmp.lt.s32.totalorder %v659, 4
        %v682 = vsel %vm678, %v662, %v665
        %v683 = vsel %vm681, %v671, 2102212464
        %v684 = vsel %vm680, %v668, %v683
        %v685 = vsel %vm679, %v682, %v684
        %v686 = vsel %vm678, %v665, %v668
        %v687 = vsel %vm681, %v674, 920167782
        %v688 = vsel %vm680, %v671, %v687
        %v689 = vsel %vm679, %v686, %v688
        %v690 = vsel %vm678, %v668, %v671
        %v691 = vsel %vm681, %v677, 1326507024
        %v692 = vsel %vm680, %v674, %v691
        %v693 = vsel %vm679, %v690, %v692
        %v694 = vshll.u32 %v654, 8
        %v695 = vand.u32 %v694, 65535
        %v696 = vshrl.u32 %v694, 16
        %v697 = vand.u32 %v693, 65535
        %v698 = vshrl.u32 %v693, 16
        %v699 = vmul.u32 %v695, %v697
        %v700 = vmul.u32 %v695, %v698
        %v701 = vmul.u32 %v696, %v697
        %v702 = vmul.u32 %v696, %v698
        %v703 = vshll.u32 %v700, 16
        %v704 = vshrl.u32 %v700, 16
        %v705 = vshll.u32 %v701, 16
        %v706 = vshrl.u32 %v701, 16
        %vm707 = vc.u32 %v699, %v703
        %v708 = vsel %vm707, 1, 0
        %v709 = vadd.s32 %v699, %v703
        %v710 = vadd.s32 %v702, %v708
        %vm711 = vc.u32 %v709, %v705
        %v712 = vsel %vm711, 1, 0
        %v713 = vadd.s32 %v709, %v705
        %v714 = vadd.s32 %v710, %v712
        %v715 = vadd.s32 %v714, %v704
        %v716 = vadd.s32 %v715, %v706
        %v717 = vand.u32 %v694, 65535
        %v718 = vshrl.u32 %v694, 16
        %v719 = vand.u32 %v689, 65535
        %v720 = vshrl.u32 %v689, 16
        %v721 = vmul.u32 %v717, %v719
        %v722 = vmul.u32 %v717, %v720
        %v723 = vmul.u32 %v718, %v719
        %v724 = vmul.u32 %v718, %v720
        %v725 = vshll.u32 %v722, 16
        %v726 = vshrl.u32 %v722, 16
        %v727 = vshll.u32 %v723, 16
        %v728 = vshrl.u32 %v723, 16
        %vm729 = vc.u32 %v721, %v725
        %v730 = vsel %vm729, 1, 0
        %v731 = vadd.s32 %v721, %v725
        %v732 = vadd.s32 %v724, %v730
        %vm733 = vc.u32 %v731, %v727
        %v734 = vsel %vm733, 1, 0
        %v735 = vadd.s32 %v731, %v727
        %v736 = vadd.s32 %v732, %v734
        %v737 = vadd.s32 %v736, %v726
        %v738 = vadd.s32 %v737, %v728
        %v739 = vmul.u32 %v694, %v685
        %v740 = vadd.s32 %v716, %v735
        %vm741 = vc.u32 %v716, %v735
        %v742 = vadd.s32 %v738, 1
        %v743 = vsel %vm741, %v742, %v738
        %v744 = vadd.s32 %v739, %v743
        %v745 = vadd.s32 %v744, 536870912
        %v746 = vshrl.u32 %v745, 30
        %v747 = vshll.u32 %v746, 30
        %v748 = vsub.s32 %v744, %v747
        %vm749 = vcmp.lt.s32.totalorder %v748, 0
        %v750 = vsub.s32 0, %v748
        %v751 = vsel %vm749, %v750, %v748
        %v752 = vclz %v751
        %v753 = vsub.s32 %v752, 2
        %vm754 = vcmp.gt.s32.totalorder 0, %v753
        %v755 = vsel %vm754, 0, %v753
        %v756 = vsub.s32 32, %v755
        %v757 = vshll.u32 %v748, %v755
        %v758 = vshrl.u32 %v740, %v756
        %v759 = vor.u32 %v757, %v758
        %v760 = vsub.s32 4294967266, %v755
        %v761 = vadd.s32 %v760, 127
        %v762 = vshll.u32 %v761, 23
        %v763 = vor.u32 4788187, %v762
        %v764 = vand.u32 2147483647, %v763
        %v766 = vcvt.s32.f32 %v759
        %v767 = vmul.f32 %v766, %v764
        %v768 = vxor.u32 %v767, 2147483648
        %v769 = vsel %vm648, %v768, %v767
        %v770 = vsub.s32 4, %v746
        %v771 = vsel %vm648, %v770, %v746
        %v772 = vsel %vm647, %v330, %v769
        %v773 = vsel %vm647, 0, %v771
        %v774 = vmul.f32 %v772, %v772
        %v775 = vmul.f32 %v774, -0.001358992
        %v776 = vadd.f32 %v775, 0.041655596
        %v777 = vmul.f32 %v774, %v776
        %v778 = vadd.f32 %v777, -0.4999988
        %v779 = vmul.f32 %v774, %v778
        %v780 = vadd.f32 1.0, %v779
        %v781 = vmul.f32 %v772, %v772
        %v782 = vmul.f32 %v781, -0.00019511016
        %v783 = vadd.f32 %v782, 0.008332121
        %v784 = vmul.f32 %v781, %v783
        %v785 = vadd.f32 %v784, -0.16666654
        %v786 = vmul.f32 %v781, %v785
        %v787 = vadd.f32 %v786, 1.0
        %v788 = vmul.f32 %v787, %v772
        %vm789 = vweird.f32 %v330
        %v790 = vadd.s32 %v773, 3
        %v791 = vand.u32 %v790, 3
        %vm792 = vcmp.lt.s32.totalorder %v791, 2
        %vm793 = vcmp.eq.s32.totalorder %v791, 0
        %v794 = vxor.u32 %v788, 2147483648
        %v795 = vsel %vm793, %v780, %v794
        %vm796 = vcmp.eq.s32.totalorder %v791, 2
        %v797 = vxor.u32 %v780, 2147483648
        %v798 = vsel %vm796, %v797, %v788
        %v799 = vsel %vm792, %v795, %v798
        %v800 = vsel %vm789, nan, %v799
        %v801 = vand.u32 2147483647, %v331
        %vm802 = vcmp.le.f32.partialorder %v801, 0.7853982
        %vm803 = vcmp.lt.s32.totalorder %v331, 0
        %v804 = vand.u32 %v331, 2139095040
        %v805 = vshrl.u32 %v804, 23
        %v806 = vsub.s32 %v805, 127
        %v807 = vand.u32 2147483647, %v331
        %v808 = vand.u32 %v807, 8388607
        %v809 = vor.u32 %v808, 8388608
        %v810 = vsub.s32 0, %v809
        %v811 = vadd.s32 %v806, 1
        %vm812 = vcmp.gt.s32.totalorder %v811, 0
        %v813 = vsel %vm812, %v811, 0
        %v814 = vshrl.u32 %v813, 5
        %v815 = vand.u32 %v813, 31
        %v816 = vsub.s32 32, %v815
        %v817 = vshrl.u32 683565275, %v816
        %v818 = vshll.u32 683565275, %v815
        %v819 = vshrl.u32 2475754826, %v816
        %v820 = vor.u32 %v818, %v819
        %v821 = vshll.u32 2475754826, %v815
        %v822 = vshrl.u32 2131351028, %v816
        %v823 = vor.u32 %v821, %v822
        %v824 = vshll.u32 2131351028, %v815
        %v825 = vshrl.u32 2102212464, %v816
        %v826 = vor.u32 %v824, %v825
        %v827 = vshll.u32 2102212464, %v815
        %v828 = vshrl.u32 920167782, %v816
        %v829 = vor.u32 %v827, %v828
        %v830 = vshll.u32 920167782, %v815
        %v831 = vshrl.u32 1326507024, %v816
        %v832 = vor.u32 %v830, %v831
        %vm833 = vcmp.lt.s32.totalorder %v814, 1
        %vm834 = vcmp.lt.s32.totalorder %v814, 2
        %vm835 = vcmp.lt.s32.totalorder %v814, 3
        %vm836 = vcmp.lt.s32.totalorder %v814, 4
        %v837 = vsel %vm833, %v817, %v820
        %v838 = vsel %vm836, %v826, 2102212464
        %v839 = vsel %vm835, %v823, %v838
        %v840 = vsel %vm834, %v837, %v839
        %v841 = vsel %vm833, %v820, %v823
        %v842 = vsel %vm836, %v829, 920167782
        %v843 = vsel %vm835, %v826, %v842
        %v844 = vsel %vm834, %v841, %v843
        %v845 = vsel %vm833, %v823, %v826
        %v846 = vsel %vm836, %v832, 1326507024
        %v847 = vsel %vm835, %v829, %v846
        %v848 = vsel %vm834, %v845, %v847
        %v849 = vshll.u32 %v809, 8
        %v850 = vand.u32 %v849, 65535
        %v851 = vshrl.u32 %v849, 16
        %v852 = vand.u32 %v848, 65535
        %v853 = vshrl.u32 %v848, 16
        %v854 = vmul.u32 %v850, %v852
        %v855 = vmul.u32 %v850, %v853
        %v856 = vmul.u32 %v851, %v852
        %v857 = vmul.u32 %v851, %v853
        %v858 = vshll.u32 %v855, 16
        %v859 = vshrl.u32 %v855, 16
        %v860 = vshll.u32 %v856, 16
        %v861 = vshrl.u32 %v856, 16
        %vm862 = vc.u32 %v854, %v858
        %v863 = vsel %vm862, 1, 0
        %v864 = vadd.s32 %v854, %v858
        %v865 = vadd.s32 %v857, %v863
        %vm866 = vc.u32 %v864, %v860
        %v867 = vsel %vm866, 1, 0
        %v868 = vadd.s32 %v864, %v860
        %v869 = vadd.s32 %v865, %v867
        %v870 = vadd.s32 %v869, %v859
        %v871 = vadd.s32 %v870, %v861
        %v872 = vand.u32 %v849, 65535
        %v873 = vshrl.u32 %v849, 16
        %v874 = vand.u32 %v844, 65535
        %v875 = vshrl.u32 %v844, 16
        %v876 = vmul.u32 %v872, %v874
        %v877 = vmul.u32 %v872, %v875
        %v878 = vmul.u32 %v873, %v874
        %v879 = vmul.u32 %v873, %v875
        %v880 = vshll.u32 %v877, 16
        %v881 = vshrl.u32 %v877, 16
        %v882 = vshll.u32 %v878, 16
        %v883 = vshrl.u32 %v878, 16
        %vm884 = vc.u32 %v876, %v880
        %v885 = vsel %vm884, 1, 0
        %v886 = vadd.s32 %v876, %v880
        %v887 = vadd.s32 %v879, %v885
        %vm888 = vc.u32 %v886, %v882
        %v889 = vsel %vm888, 1, 0
        %v890 = vadd.s32 %v886, %v882
        %v891 = vadd.s32 %v887, %v889
        %v892 = vadd.s32 %v891, %v881
        %v893 = vadd.s32 %v892, %v883
        %v894 = vmul.u32 %v849, %v840
        %v895 = vadd.s32 %v871, %v890
        %vm896 = vc.u32 %v871, %v890
        %v897 = vadd.s32 %v893, 1
        %v898 = vsel %vm896, %v897, %v893
        %v899 = vadd.s32 %v894, %v898
        %v900 = vadd.s32 %v899, 536870912
        %v901 = vshrl.u32 %v900, 30
        %v902 = vshll.u32 %v901, 30
        %v903 = vsub.s32 %v899, %v902
        %vm904 = vcmp.lt.s32.totalorder %v903, 0
        %v905 = vsub.s32 0, %v903
        %v906 = vsel %vm904, %v905, %v903
        %v907 = vclz %v906
        %v908 = vsub.s32 %v907, 2
        %vm909 = vcmp.gt.s32.totalorder 0, %v908
        %v910 = vsel %vm909, 0, %v908
        %v911 = vsub.s32 32, %v910
        %v912 = vshll.u32 %v903, %v910
        %v913 = vshrl.u32 %v895, %v911
        %v914 = vor.u32 %v912, %v913
        %v915 = vsub.s32 4294967266, %v910
        %v916 = vadd.s32 %v915, 127
        %v917 = vshll.u32 %v916, 23
        %v918 = vor.u32 4788187, %v917
        %v919 = vand.u32 2147483647, %v918
        %v921 = vcvt.s32.f32 %v914
        %v922 = vmul.f32 %v921, %v919
        %v923 = vxor.u32 %v922, 2147483648
        %v924 = vsel %vm803, %v923, %v922
        %v925 = vsub.s32 4, %v901
        %v926 = vsel %vm803, %v925, %v901
        %v927 = vsel %vm802, %v331, %v924
        %v928 = vsel %vm802, 0, %v926
        %v929 = vmul.f32 %v927, %v927
        %v930 = vmul.f32 %v929, -0.001358992
        %v931 = vadd.f32 %v930, 0.041655596
        %v932 = vmul.f32 %v929, %v931
        %v933 = vadd.f32 %v932, -0.4999988
        %v934 = vmul.f32 %v929, %v933
        %v935 = vadd.f32 1.0, %v934
        %v936 = vmul.f32 %v927, %v927
        %v937 = vmul.f32 %v936, -0.00019511016
        %v938 = vadd.f32 %v937, 0.008332121
        %v939 = vmul.f32 %v936, %v938
        %v940 = vadd.f32 %v939, -0.16666654
        %v941 = vmul.f32 %v936, %v940
        %v942 = vadd.f32 %v941, 1.0
        %v943 = vmul.f32 %v942, %v927
        %vm944 = vweird.f32 %v331
        %v945 = vadd.s32 %v928, 3
        %v946 = vand.u32 %v945, 3
        %vm947 = vcmp.lt.s32.totalorder %v946, 2
        %vm948 = vcmp.eq.s32.totalorder %v946, 0
        %v949 = vxor.u32 %v943, 2147483648
        %v950 = vsel %vm948, %v935, %v949
        %vm951 = vcmp.eq.s32.totalorder %v946, 2
        %v952 = vxor.u32 %v935, 2147483648
        %v953 = vsel %vm951, %v952, %v943
        %v954 = vsel %vm947, %v950, %v953
        %v955 = vsel %vm944, nan, %v954
        %v956 = vand.u32 2147483647, %v332
        %vm957 = vcmp.le.f32.partialorder %v956, 0.7853982
        %vm958 = vcmp.lt.s32.totalorder %v332, 0
        %v959 = vand.u32 %v332, 2139095040
        %v960 = vshrl.u32 %v959, 23
        %v961 = vsub.s32 %v960, 127
        %v962 = vand.u32 2147483647, %v332
        %v963 = vand.u32 %v962, 8388607
        %v964 = vor.u32 %v963, 8388608
        %v965 = vsub.s32 0, %v964
        %v966 = vadd.s32 %v961, 1
        %vm967 = vcmp.gt.s32.totalorder %v966, 0
        %v968 = vsel %vm967, %v966, 0
        %v969 = vshrl.u32 %v968, 5
        %v970 = vand.u32 %v968, 31
        %v971 = vsub.s32 32, %v970
        %v972 = vshrl.u32 683565275, %v971
        %v973 = vshll.u32 683565275, %v970
        %v974 = vshrl.u32 2475754826, %v971
        %v975 = vor.u32 %v973, %v974
        %v976 = vshll.u32 2475754826, %v970
        %v977 = vshrl.u32 2131351028, %v971
        %v978 = vor.u32 %v976, %v977
        %v979 = vshll.u32 2131351028, %v970
        %v980 = vshrl.u32 2102212464, %v971
        %v981 = vor.u32 %v979, %v980
        %v982 = vshll.u32 2102212464, %v970
        %v983 = vshrl.u32 920167782, %v971
        %v984 = vor.u32 %v982, %v983
        %v985 = vshll.u32 920167782, %v970
        %v986 = vshrl.u32 1326507024, %v971
        %v987 = vor.u32 %v985, %v986
        %vm988 = vcmp.lt.s32.totalorder %v969, 1
        %vm989 = vcmp.lt.s32.totalorder %v969, 2
        %vm990 = vcmp.lt.s32.totalorder %v969, 3
        %vm991 = vcmp.lt.s32.totalorder %v969, 4
        %v992 = vsel %vm988, %v972, %v975
        %v993 = vsel %vm991, %v981, 2102212464
        %v994 = vsel %vm990, %v978, %v993
        %v995 = vsel %vm989, %v992, %v994
        %v996 = vsel %vm988, %v975, %v978
        %v997 = vsel %vm991, %v984, 920167782
        %v998 = vsel %vm990, %v981, %v997
        %v999 = vsel %vm989, %v996, %v998
        %v1000 = vsel %vm988, %v978, %v981
        %v1001 = vsel %vm991, %v987, 1326507024
        %v1002 = vsel %vm990, %v984, %v1001
        %v1003 = vsel %vm989, %v1000, %v1002
        %v1004 = vshll.u32 %v964, 8
        %v1005 = vand.u32 %v1004, 65535
        %v1006 = vshrl.u32 %v1004, 16
        %v1007 = vand.u32 %v1003, 65535
        %v1008 = vshrl.u32 %v1003, 16
        %v1009 = vmul.u32 %v1005, %v1007
        %v1010 = vmul.u32 %v1005, %v1008
        %v1011 = vmul.u32 %v1006, %v1007
        %v1012 = vmul.u32 %v1006, %v1008
        %v1013 = vshll.u32 %v1010, 16
        %v1014 = vshrl.u32 %v1010, 16
        %v1015 = vshll.u32 %v1011, 16
        %v1016 = vshrl.u32 %v1011, 16
        %vm1017 = vc.u32 %v1009, %v1013
        %v1018 = vsel %vm1017, 1, 0
        %v1019 = vadd.s32 %v1009, %v1013
        %v1020 = vadd.s32 %v1012, %v1018
        %vm1021 = vc.u32 %v1019, %v1015
        %v1022 = vsel %vm1021, 1, 0
        %v1023 = vadd.s32 %v1019, %v1015
        %v1024 = vadd.s32 %v1020, %v1022
        %v1025 = vadd.s32 %v1024, %v1014
        %v1026 = vadd.s32 %v1025, %v1016
        %v1027 = vand.u32 %v1004, 65535
        %v1028 = vshrl.u32 %v1004, 16
        %v1029 = vand.u32 %v999, 65535
        %v1030 = vshrl.u32 %v999, 16
        %v1031 = vmul.u32 %v1027, %v1029
        %v1032 = vmul.u32 %v1027, %v1030
        %v1033 = vmul.u32 %v1028, %v1029
        %v1034 = vmul.u32 %v1028, %v1030
        %v1035 = vshll.u32 %v1032, 16
        %v1036 = vshrl.u32 %v1032, 16
        %v1037 = vshll.u32 %v1033, 16
        %v1038 = vshrl.u32 %v1033, 16
        %vm1039 = vc.u32 %v1031, %v1035
        %v1040 = vsel %vm1039, 1, 0
        %v1041 = vadd.s32 %v1031, %v1035
        %v1042 = vadd.s32 %v1034, %v1040
        %vm1043 = vc.u32 %v1041, %v1037
        %v1044 = vsel %vm1043, 1, 0
        %v1045 = vadd.s32 %v1041, %v1037
        %v1046 = vadd.s32 %v1042, %v1044
        %v1047 = vadd.s32 %v1046, %v1036
        %v1048 = vadd.s32 %v1047, %v1038
        %v1049 = vmul.u32 %v1004, %v995
        %v1050 = vadd.s32 %v1026, %v1045
        %vm1051 = vc.u32 %v1026, %v1045
        %v1052 = vadd.s32 %v1048, 1
        %v1053 = vsel %vm1051, %v1052, %v1048
        %v1054 = vadd.s32 %v1049, %v1053
        %v1055 = vadd.s32 %v1054, 536870912
        %v1056 = vshrl.u32 %v1055, 30
        %v1057 = vshll.u32 %v1056, 30
        %v1058 = vsub.s32 %v1054, %v1057
        %vm1059 = vcmp.lt.s32.totalorder %v1058, 0
        %v1060 = vsub.s32 0, %v1058
        %v1061 = vsel %vm1059, %v1060, %v1058
        %v1062 = vclz %v1061
        %v1063 = vsub.s32 %v1062, 2
        %vm1064 = vcmp.gt.s32.totalorder 0, %v1063
        %v1065 = vsel %vm1064, 0, %v1063
        %v1066 = vsub.s32 32, %v1065
        %v1067 = vshll.u32 %v1058, %v1065
        %v1068 = vshrl.u32 %v1050, %v1066
        %v1069 = vor.u32 %v1067, %v1068
        %v1070 = vsub.s32 4294967266, %v1065
        %v1071 = vadd.s32 %v1070, 127
        %v1072 = vshll.u32 %v1071, 23
        %v1073 = vor.u32 4788187, %v1072
        %v1074 = vand.u32 2147483647, %v1073
        %v1076 = vcvt.s32.f32 %v1069
        %v1077 = vmul.f32 %v1076, %v1074
        %v1078 = vxor.u32 %v1077, 2147483648
        %v1079 = vsel %vm958, %v1078, %v1077
        %v1080 = vsub.s32 4, %v1056
        %v1081 = vsel %vm958, %v1080, %v1056
        %v1082 = vsel %vm957, %v332, %v1079
        %v1083 = vsel %vm957, 0, %v1081
        %v1084 = vmul.f32 %v1082, %v1082
        %v1085 = vmul.f32 %v1084, -0.001358992
        %v1086 = vadd.f32 %v1085, 0.041655596
        %v1087 = vmul.f32 %v1084, %v1086
        %v1088 = vadd.f32 %v1087, -0.4999988
        %v1089 = vmul.f32 %v1084, %v1088
        %v1090 = vadd.f32 1.0, %v1089
        %v1091 = vmul.f32 %v1082, %v1082
        %v1092 = vmul.f32 %v1091, -0.00019511016
        %v1093 = vadd.f32 %v1092, 0.008332121
        %v1094 = vmul.f32 %v1091, %v1093
        %v1095 = vadd.f32 %v1094, -0.16666654
        %v1096 = vmul.f32 %v1091, %v1095
        %v1097 = vadd.f32 %v1096, 1.0
        %v1098 = vmul.f32 %v1097, %v1082
        %vm1099 = vweird.f32 %v332
        %v1100 = vadd.s32 %v1083, 3
        %v1101 = vand.u32 %v1100, 3
        %vm1102 = vcmp.lt.s32.totalorder %v1101, 2
        %vm1103 = vcmp.eq.s32.totalorder %v1101, 0
        %v1104 = vxor.u32 %v1098, 2147483648
        %v1105 = vsel %vm1103, %v1090, %v1104
        %vm1106 = vcmp.eq.s32.totalorder %v1101, 2
        %v1107 = vxor.u32 %v1090, 2147483648
        %v1108 = vsel %vm1106, %v1107, %v1098
        %v1109 = vsel %vm1102, %v1105, %v1108
        %v1110 = vsel %vm1099, nan, %v1109
        %v1111 = vand.u32 2147483647, %v333
        %vm1112 = vcmp.le.f32.partialorder %v1111, 0.7853982
        %vm1113 = vcmp.lt.s32.totalorder %v333, 0
        %v1114 = vand.u32 %v333, 2139095040
        %v1115 = vshrl.u32 %v1114, 23
        %v1116 = vsub.s32 %v1115, 127
        %v1117 = vand.u32 2147483647, %v333
        %v1118 = vand.u32 %v1117, 8388607
        %v1119 = vor.u32 %v1118, 8388608
        %v1120 = vsub.s32 0, %v1119
        %v1121 = vadd.s32 %v1116, 1
        %vm1122 = vcmp.gt.s32.totalorder %v1121, 0
        %v1123 = vsel %vm1122, %v1121, 0
        %v1124 = vshrl.u32 %v1123, 5
        %v1125 = vand.u32 %v1123, 31
        %v1126 = vsub.s32 32, %v1125
        %v1127 = vshrl.u32 683565275, %v1126
        %v1128 = vshll.u32 683565275, %v1125
        %v1129 = vshrl.u32 2475754826, %v1126
        %v1130 = vor.u32 %v1128, %v1129
        %v1131 = vshll.u32 2475754826, %v1125
        %v1132 = vshrl.u32 2131351028, %v1126
        %v1133 = vor.u32 %v1131, %v1132
        %v1134 = vshll.u32 2131351028, %v1125
        %v1135 = vshrl.u32 2102212464, %v1126
        %v1136 = vor.u32 %v1134, %v1135
        %v1137 = vshll.u32 2102212464, %v1125
        %v1138 = vshrl.u32 920167782, %v1126
        %v1139 = vor.u32 %v1137, %v1138
        %v1140 = vshll.u32 920167782, %v1125
        %v1141 = vshrl.u32 1326507024, %v1126
        %v1142 = vor.u32 %v1140, %v1141
        %vm1143 = vcmp.lt.s32.totalorder %v1124, 1
        %vm1144 = vcmp.lt.s32.totalorder %v1124, 2
        %vm1145 = vcmp.lt.s32.totalorder %v1124, 3
        %vm1146 = vcmp.lt.s32.totalorder %v1124, 4
        %v1147 = vsel %vm1143, %v1127, %v1130
        %v1148 = vsel %vm1146, %v1136, 2102212464
        %v1149 = vsel %vm1145, %v1133, %v1148
        %v1150 = vsel %vm1144, %v1147, %v1149
        %v1151 = vsel %vm1143, %v1130, %v1133
        %v1152 = vsel %vm1146, %v1139, 920167782
        %v1153 = vsel %vm1145, %v1136, %v1152
        %v1154 = vsel %vm1144, %v1151, %v1153
        %v1155 = vsel %vm1143, %v1133, %v1136
        %v1156 = vsel %vm1146, %v1142, 1326507024
        %v1157 = vsel %vm1145, %v1139, %v1156
        %v1158 = vsel %vm1144, %v1155, %v1157
        %v1159 = vshll.u32 %v1119, 8
        %v1160 = vand.u32 %v1159, 65535
        %v1161 = vshrl.u32 %v1159, 16
        %v1162 = vand.u32 %v1158, 65535
        %v1163 = vshrl.u32 %v1158, 16
        %v1164 = vmul.u32 %v1160, %v1162
        %v1165 = vmul.u32 %v1160, %v1163
        %v1166 = vmul.u32 %v1161, %v1162
        %v1167 = vmul.u32 %v1161, %v1163
        %v1168 = vshll.u32 %v1165, 16
        %v1169 = vshrl.u32 %v1165, 16
        %v1170 = vshll.u32 %v1166, 16
        %v1171 = vshrl.u32 %v1166, 16
        %vm1172 = vc.u32 %v1164, %v1168
        %v1173 = vsel %vm1172, 1, 0
        %v1174 = vadd.s32 %v1164, %v1168
        %v1175 = vadd.s32 %v1167, %v1173
        %vm1176 = vc.u32 %v1174, %v1170
        %v1177 = vsel %vm1176, 1, 0
        %v1178 = vadd.s32 %v1174, %v1170
        %v1179 = vadd.s32 %v1175, %v1177
        %v1180 = vadd.s32 %v1179, %v1169
        %v1181 = vadd.s32 %v1180, %v1171
        %v1182 = vand.u32 %v1159, 65535
        %v1183 = vshrl.u32 %v1159, 16
        %v1184 = vand.u32 %v1154, 65535
        %v1185 = vshrl.u32 %v1154, 16
        %v1186 = vmul.u32 %v1182, %v1184
        %v1187 = vmul.u32 %v1182, %v1185
        %v1188 = vmul.u32 %v1183, %v1184
        %v1189 = vmul.u32 %v1183, %v1185
        %v1190 = vshll.u32 %v1187, 16
        %v1191 = vshrl.u32 %v1187, 16
        %v1192 = vshll.u32 %v1188, 16
        %v1193 = vshrl.u32 %v1188, 16
        %vm1194 = vc.u32 %v1186, %v1190
        %v1195 = vsel %vm1194, 1, 0
        %v1196 = vadd.s32 %v1186, %v1190
        %v1197 = vadd.s32 %v1189, %v1195
        %vm1198 = vc.u32 %v1196, %v1192
        %v1199 = vsel %vm1198, 1, 0
        %v1200 = vadd.s32 %v1196, %v1192
        %v1201 = vadd.s32 %v1197, %v1199
        %v1202 = vadd.s32 %v1201, %v1191
        %v1203 = vadd.s32 %v1202, %v1193
        %v1204 = vmul.u32 %v1159, %v1150
        %v1205 = vadd.s32 %v1181, %v1200
        %vm1206 = vc.u32 %v1181, %v1200
        %v1207 = vadd.s32 %v1203, 1
        %v1208 = vsel %vm1206, %v1207, %v1203
        %v1209 = vadd.s32 %v1204, %v1208
        %v1210 = vadd.s32 %v1209, 536870912
        %v1211 = vshrl.u32 %v1210, 30
        %v1212 = vshll.u32 %v1211, 30
        %v1213 = vsub.s32 %v1209, %v1212
        %vm1214 = vcmp.lt.s32.totalorder %v1213, 0
        %v1215 = vsub.s32 0, %v1213
        %v1216 = vsel %vm1214, %v1215, %v1213
        %v1217 = vclz %v1216
        %v1218 = vsub.s32 %v1217, 2
        %vm1219 = vcmp.gt.s32.totalorder 0, %v1218
        %v1220 = vsel %vm1219, 0, %v1218
        %v1221 = vsub.s32 32, %v1220
        %v1222 = vshll.u32 %v1213, %v1220
        %v1223 = vshrl.u32 %v1205, %v1221
        %v1224 = vor.u32 %v1222, %v1223
        %v1225 = vsub.s32 4294967266, %v1220
        %v1226 = vadd.s32 %v1225, 127
        %v1227 = vshll.u32 %v1226, 23
        %v1228 = vor.u32 4788187, %v1227
        %v1229 = vand.u32 2147483647, %v1228
        %v1231 = vcvt.s32.f32 %v1224
        %v1232 = vmul.f32 %v1231, %v1229
        %v1233 = vxor.u32 %v1232, 2147483648
        %v1234 = vsel %vm1113, %v1233, %v1232
        %v1235 = vsub.s32 4, %v1211
        %v1236 = vsel %vm1113, %v1235, %v1211
        %v1237 = vsel %vm1112, %v333, %v1234
        %v1238 = vsel %vm1112, 0, %v1236
        %v1239 = vmul.f32 %v1237, %v1237
        %v1240 = vmul.f32 %v1239, -0.001358992
        %v1241 = vadd.f32 %v1240, 0.041655596
        %v1242 = vmul.f32 %v1239, %v1241
        %v1243 = vadd.f32 %v1242, -0.4999988
        %v1244 = vmul.f32 %v1239, %v1243
        %v1245 = vadd.f32 1.0, %v1244
        %v1246 = vmul.f32 %v1237, %v1237
        %v1247 = vmul.f32 %v1246, -0.00019511016
        %v1248 = vadd.f32 %v1247, 0.008332121
        %v1249 = vmul.f32 %v1246, %v1248
        %v1250 = vadd.f32 %v1249, -0.16666654
        %v1251 = vmul.f32 %v1246, %v1250
        %v1252 = vadd.f32 %v1251, 1.0
        %v1253 = vmul.f32 %v1252, %v1237
        %vm1254 = vweird.f32 %v333
        %v1255 = vadd.s32 %v1238, 3
        %v1256 = vand.u32 %v1255, 3
        %vm1257 = vcmp.lt.s32.totalorder %v1256, 2
        %vm1258 = vcmp.eq.s32.totalorder %v1256, 0
        %v1259 = vxor.u32 %v1253, 2147483648
        %v1260 = vsel %vm1258, %v1245, %v1259
        %vm1261 = vcmp.eq.s32.totalorder %v1256, 2
        %v1262 = vxor.u32 %v1245, 2147483648
        %v1263 = vsel %vm1261, %v1262, %v1253
        %v1264 = vsel %vm1257, %v1260, %v1263
        %v1265 = vsel %vm1254, nan, %v1264
        %v1266 = vand.u32 2147483647, %v334
        %vm1267 = vcmp.le.f32.partialorder %v1266, 0.7853982
        %vm1268 = vcmp.lt.s32.totalorder %v334, 0
        %v1269 = vand.u32 %v334, 2139095040
        %v1270 = vshrl.u32 %v1269, 23
        %v1271 = vsub.s32 %v1270, 127
        %v1272 = vand.u32 2147483647, %v334
        %v1273 = vand.u32 %v1272, 8388607
        %v1274 = vor.u32 %v1273, 8388608
        %v1275 = vsub.s32 0, %v1274
        %v1276 = vadd.s32 %v1271, 1
        %vm1277 = vcmp.gt.s32.totalorder %v1276, 0
        %v1278 = vsel %vm1277, %v1276, 0
        %v1279 = vshrl.u32 %v1278, 5
        %v1280 = vand.u32 %v1278, 31
        %v1281 = vsub.s32 32, %v1280
        %v1282 = vshrl.u32 683565275, %v1281
        %v1283 = vshll.u32 683565275, %v1280
        %v1284 = vshrl.u32 2475754826, %v1281
        %v1285 = vor.u32 %v1283, %v1284
        %v1286 = vshll.u32 2475754826, %v1280
        %v1287 = vshrl.u32 2131351028, %v1281
        %v1288 = vor.u32 %v1286, %v1287
        %v1289 = vshll.u32 2131351028, %v1280
        %v1290 = vshrl.u32 2102212464, %v1281
        %v1291 = vor.u32 %v1289, %v1290
        %v1292 = vshll.u32 2102212464, %v1280
        %v1293 = vshrl.u32 920167782, %v1281
        %v1294 = vor.u32 %v1292, %v1293
        %v1295 = vshll.u32 920167782, %v1280
        %v1296 = vshrl.u32 1326507024, %v1281
        %v1297 = vor.u32 %v1295, %v1296
        %vm1298 = vcmp.lt.s32.totalorder %v1279, 1
        %vm1299 = vcmp.lt.s32.totalorder %v1279, 2
        %vm1300 = vcmp.lt.s32.totalorder %v1279, 3
        %vm1301 = vcmp.lt.s32.totalorder %v1279, 4
        %v1302 = vsel %vm1298, %v1282, %v1285
        %v1303 = vsel %vm1301, %v1291, 2102212464
        %v1304 = vsel %vm1300, %v1288, %v1303
        %v1305 = vsel %vm1299, %v1302, %v1304
        %v1306 = vsel %vm1298, %v1285, %v1288
        %v1307 = vsel %vm1301, %v1294, 920167782
        %v1308 = vsel %vm1300, %v1291, %v1307
        %v1309 = vsel %vm1299, %v1306, %v1308
        %v1310 = vsel %vm1298, %v1288, %v1291
        %v1311 = vsel %vm1301, %v1297, 1326507024
        %v1312 = vsel %vm1300, %v1294, %v1311
        %v1313 = vsel %vm1299, %v1310, %v1312
        %v1314 = vshll.u32 %v1274, 8
        %v1315 = vand.u32 %v1314, 65535
        %v1316 = vshrl.u32 %v1314, 16
        %v1317 = vand.u32 %v1313, 65535
        %v1318 = vshrl.u32 %v1313, 16
        %v1319 = vmul.u32 %v1315, %v1317
        %v1320 = vmul.u32 %v1315, %v1318
        %v1321 = vmul.u32 %v1316, %v1317
        %v1322 = vmul.u32 %v1316, %v1318
        %v1323 = vshll.u32 %v1320, 16
        %v1324 = vshrl.u32 %v1320, 16
        %v1325 = vshll.u32 %v1321, 16
        %v1326 = vshrl.u32 %v1321, 16
        %vm1327 = vc.u32 %v1319, %v1323
        %v1328 = vsel %vm1327, 1, 0
        %v1329 = vadd.s32 %v1319, %v1323
        %v1330 = vadd.s32 %v1322, %v1328
        %vm1331 = vc.u32 %v1329, %v1325
        %v1332 = vsel %vm1331, 1, 0
        %v1333 = vadd.s32 %v1329, %v1325
        %v1334 = vadd.s32 %v1330, %v1332
        %v1335 = vadd.s32 %v1334, %v1324
        %v1336 = vadd.s32 %v1335, %v1326
        %v1337 = vand.u32 %v1314, 65535
        %v1338 = vshrl.u32 %v1314, 16
        %v1339 = vand.u32 %v1309, 65535
        %v1340 = vshrl.u32 %v1309, 16
        %v1341 = vmul.u32 %v1337, %v1339
        %v1342 = vmul.u32 %v1337, %v1340
        %v1343 = vmul.u32 %v1338, %v1339
        %v1344 = vmul.u32 %v1338, %v1340
        %v1345 = vshll.u32 %v1342, 16
        %v1346 = vshrl.u32 %v1342, 16
        %v1347 = vshll.u32 %v1343, 16
        %v1348 = vshrl.u32 %v1343, 16
        %vm1349 = vc.u32 %v1341, %v1345
        %v1350 = vsel %vm1349, 1, 0
        %v1351 = vadd.s32 %v1341, %v1345
        %v1352 = vadd.s32 %v1344, %v1350
        %vm1353 = vc.u32 %v1351, %v1347
        %v1354 = vsel %vm1353, 1, 0
        %v1355 = vadd.s32 %v1351, %v1347
        %v1356 = vadd.s32 %v1352, %v1354
        %v1357 = vadd.s32 %v1356, %v1346
        %v1358 = vadd.s32 %v1357, %v1348
        %v1359 = vmul.u32 %v1314, %v1305
        %v1360 = vadd.s32 %v1336, %v1355
        %vm1361 = vc.u32 %v1336, %v1355
        %v1362 = vadd.s32 %v1358, 1
        %v1363 = vsel %vm1361, %v1362, %v1358
        %v1364 = vadd.s32 %v1359, %v1363
        %v1365 = vadd.s32 %v1364, 536870912
        %v1366 = vshrl.u32 %v1365, 30
        %v1367 = vshll.u32 %v1366, 30
        %v1368 = vsub.s32 %v1364, %v1367
        %vm1369 = vcmp.lt.s32.totalorder %v1368, 0
        %v1370 = vsub.s32 0, %v1368
        %v1371 = vsel %vm1369, %v1370, %v1368
        %v1372 = vclz %v1371
        %v1373 = vsub.s32 %v1372, 2
        %vm1374 = vcmp.gt.s32.totalorder 0, %v1373
        %v1375 = vsel %vm1374, 0, %v1373
        %v1376 = vsub.s32 32, %v1375
        %v1377 = vshll.u32 %v1368, %v1375
        %v1378 = vshrl.u32 %v1360, %v1376
        %v1379 = vor.u32 %v1377, %v1378
        %v1380 = vsub.s32 4294967266, %v1375
        %v1381 = vadd.s32 %v1380, 127
        %v1382 = vshll.u32 %v1381, 23
        %v1383 = vor.u32 4788187, %v1382
        %v1384 = vand.u32 2147483647, %v1383
        %v1386 = vcvt.s32.f32 %v1379
        %v1387 = vmul.f32 %v1386, %v1384
        %v1388 = vxor.u32 %v1387, 2147483648
        %v1389 = vsel %vm1268, %v1388, %v1387
        %v1390 = vsub.s32 4, %v1366
        %v1391 = vsel %vm1268, %v1390, %v1366
        %v1392 = vsel %vm1267, %v334, %v1389
        %v1393 = vsel %vm1267, 0, %v1391
        %v1394 = vmul.f32 %v1392, %v1392
        %v1395 = vmul.f32 %v1394, -0.001358992
        %v1396 = vadd.f32 %v1395, 0.041655596
        %v1397 = vmul.f32 %v1394, %v1396
        %v1398 = vadd.f32 %v1397, -0.4999988
        %v1399 = vmul.f32 %v1394, %v1398
        %v1400 = vadd.f32 1.0, %v1399
        %v1401 = vmul.f32 %v1392, %v1392
        %v1402 = vmul.f32 %v1401, -0.00019511016
        %v1403 = vadd.f32 %v1402, 0.008332121
        %v1404 = vmul.f32 %v1401, %v1403
        %v1405 = vadd.f32 %v1404, -0.16666654
        %v1406 = vmul.f32 %v1401, %v1405
        %v1407 = vadd.f32 %v1406, 1.0
        %v1408 = vmul.f32 %v1407, %v1392
        %vm1409 = vweird.f32 %v334
        %v1410 = vadd.s32 %v1393, 3
        %v1411 = vand.u32 %v1410, 3
        %vm1412 = vcmp.lt.s32.totalorder %v1411, 2
        %vm1413 = vcmp.eq.s32.totalorder %v1411, 0
        %v1414 = vxor.u32 %v1408, 2147483648
        %v1415 = vsel %vm1413, %v1400, %v1414
        %vm1416 = vcmp.eq.s32.totalorder %v1411, 2
        %v1417 = vxor.u32 %v1400, 2147483648
        %v1418 = vsel %vm1416, %v1417, %v1408
        %v1419 = vsel %vm1412, %v1415, %v1418
        %v1420 = vsel %vm1409, nan, %v1419
        %v1421 = vand.u32 2147483647, %v335
        %vm1422 = vcmp.le.f32.partialorder %v1421, 0.7853982
        %vm1423 = vcmp.lt.s32.totalorder %v335, 0
        %v1424 = vand.u32 %v335, 2139095040
        %v1425 = vshrl.u32 %v1424, 23
        %v1426 = vsub.s32 %v1425, 127
        %v1427 = vand.u32 2147483647, %v335
        %v1428 = vand.u32 %v1427, 8388607
        %v1429 = vor.u32 %v1428, 8388608
        %v1430 = vsub.s32 0, %v1429
        %v1431 = vadd.s32 %v1426, 1
        %vm1432 = vcmp.gt.s32.totalorder %v1431, 0
        %v1433 = vsel %vm1432, %v1431, 0
        %v1434 = vshrl.u32 %v1433, 5
        %v1435 = vand.u32 %v1433, 31
        %v1436 = vsub.s32 32, %v1435
        %v1437 = vshrl.u32 683565275, %v1436
        %v1438 = vshll.u32 683565275, %v1435
        %v1439 = vshrl.u32 2475754826, %v1436
        %v1440 = vor.u32 %v1438, %v1439
        %v1441 = vshll.u32 2475754826, %v1435
        %v1442 = vshrl.u32 2131351028, %v1436
        %v1443 = vor.u32 %v1441, %v1442
        %v1444 = vshll.u32 2131351028, %v1435
        %v1445 = vshrl.u32 2102212464, %v1436
        %v1446 = vor.u32 %v1444, %v1445
        %v1447 = vshll.u32 2102212464, %v1435
        %v1448 = vshrl.u32 920167782, %v1436
        %v1449 = vor.u32 %v1447, %v1448
        %v1450 = vshll.u32 920167782, %v1435
        %v1451 = vshrl.u32 1326507024, %v1436
        %v1452 = vor.u32 %v1450, %v1451
        %vm1453 = vcmp.lt.s32.totalorder %v1434, 1
        %vm1454 = vcmp.lt.s32.totalorder %v1434, 2
        %vm1455 = vcmp.lt.s32.totalorder %v1434, 3
        %vm1456 = vcmp.lt.s32.totalorder %v1434, 4
        %v1457 = vsel %vm1453, %v1437, %v1440
        %v1458 = vsel %vm1456, %v1446, 2102212464
        %v1459 = vsel %vm1455, %v1443, %v1458
        %v1460 = vsel %vm1454, %v1457, %v1459
        %v1461 = vsel %vm1453, %v1440, %v1443
        %v1462 = vsel %vm1456, %v1449, 920167782
        %v1463 = vsel %vm1455, %v1446, %v1462
        %v1464 = vsel %vm1454, %v1461, %v1463
        %v1465 = vsel %vm1453, %v1443, %v1446
        %v1466 = vsel %vm1456, %v1452, 1326507024
        %v1467 = vsel %vm1455, %v1449, %v1466
        %v1468 = vsel %vm1454, %v1465, %v1467
        %v1469 = vshll.u32 %v1429, 8
        %v1470 = vand.u32 %v1469, 65535
        %v1471 = vshrl.u32 %v1469, 16
        %v1472 = vand.u32 %v1468, 65535
        %v1473 = vshrl.u32 %v1468, 16
        %v1474 = vmul.u32 %v1470, %v1472
        %v1475 = vmul.u32 %v1470, %v1473
        %v1476 = vmul.u32 %v1471, %v1472
        %v1477 = vmul.u32 %v1471, %v1473
        %v1478 = vshll.u32 %v1475, 16
        %v1479 = vshrl.u32 %v1475, 16
        %v1480 = vshll.u32 %v1476, 16
        %v1481 = vshrl.u32 %v1476, 16
        %vm1482 = vc.u32 %v1474, %v1478
        %v1483 = vsel %vm1482, 1, 0
        %v1484 = vadd.s32 %v1474, %v1478
        %v1485 = vadd.s32 %v1477, %v1483
        %vm1486 = vc.u32 %v1484, %v1480
        %v1487 = vsel %vm1486, 1, 0
        %v1488 = vadd.s32 %v1484, %v1480
        %v1489 = vadd.s32 %v1485, %v1487
        %v1490 = vadd.s32 %v1489, %v1479
        %v1491 = vadd.s32 %v1490, %v1481
        %v1492 = vand.u32 %v1469, 65535
        %v1493 = vshrl.u32 %v1469, 16
        %v1494 = vand.u32 %v1464, 65535
        %v1495 = vshrl.u32 %v1464, 16
        %v1496 = vmul.u32 %v1492, %v1494
        %v1497 = vmul.u32 %v1492, %v1495
        %v1498 = vmul.u32 %v1493, %v1494
        %v1499 = vmul.u32 %v1493, %v1495
        %v1500 = vshll.u32 %v1497, 16
        %v1501 = vshrl.u32 %v1497, 16
        %v1502 = vshll.u32 %v1498, 16
        %v1503 = vshrl.u32 %v1498, 16
        %vm1504 = vc.u32 %v1496, %v1500
        %v1505 = vsel %vm1504, 1, 0
        %v1506 = vadd.s32 %v1496, %v1500
        %v1507 = vadd.s32 %v1499, %v1505
        %vm1508 = vc.u32 %v1506, %v1502
        %v1509 = vsel %vm1508, 1, 0
        %v1510 = vadd.s32 %v1506, %v1502
        %v1511 = vadd.s32 %v1507, %v1509
        %v1512 = vadd.s32 %v1511, %v1501
        %v1513 = vadd.s32 %v1512, %v1503
        %v1514 = vmul.u32 %v1469, %v1460
        %v1515 = vadd.s32 %v1491, %v1510
        %vm1516 = vc.u32 %v1491, %v1510
        %v1517 = vadd.s32 %v1513, 1
        %v1518 = vsel %vm1516, %v1517, %v1513
        %v1519 = vadd.s32 %v1514, %v1518
        %v1520 = vadd.s32 %v1519, 536870912
        %v1521 = vshrl.u32 %v1520, 30
        %v1522 = vshll.u32 %v1521, 30
        %v1523 = vsub.s32 %v1519, %v1522
        %vm1524 = vcmp.lt.s32.totalorder %v1523, 0
        %v1525 = vsub.s32 0, %v1523
        %v1526 = vsel %vm1524, %v1525, %v1523
        %v1527 = vclz %v1526
        %v1528 = vsub.s32 %v1527, 2
        %vm1529 = vcmp.gt.s32.totalorder 0, %v1528
        %v1530 = vsel %vm1529, 0, %v1528
        %v1531 = vsub.s32 32, %v1530
        %v1532 = vshll.u32 %v1523, %v1530
        %v1533 = vshrl.u32 %v1515, %v1531
        %v1534 = vor.u32 %v1532, %v1533
        %v1535 = vsub.s32 4294967266, %v1530
        %v1536 = vadd.s32 %v1535, 127
        %v1537 = vshll.u32 %v1536, 23
        %v1538 = vor.u32 4788187, %v1537
        %v1539 = vand.u32 2147483647, %v1538
        %v1541 = vcvt.s32.f32 %v1534
        %v1542 = vmul.f32 %v1541, %v1539
        %v1543 = vxor.u32 %v1542, 2147483648
        %v1544 = vsel %vm1423, %v1543, %v1542
        %v1545 = vsub.s32 4, %v1521
        %v1546 = vsel %vm1423, %v1545, %v1521
        %v1547 = vsel %vm1422, %v335, %v1544
        %v1548 = vsel %vm1422, 0, %v1546
        %v1549 = vmul.f32 %v1547, %v1547
        %v1550 = vmul.f32 %v1549, -0.001358992
        %v1551 = vadd.f32 %v1550, 0.041655596
        %v1552 = vmul.f32 %v1549, %v1551
        %v1553 = vadd.f32 %v1552, -0.4999988
        %v1554 = vmul.f32 %v1549, %v1553
        %v1555 = vadd.f32 1.0, %v1554
        %v1556 = vmul.f32 %v1547, %v1547
        %v1557 = vmul.f32 %v1556, -0.00019511016
        %v1558 = vadd.f32 %v1557, 0.008332121
        %v1559 = vmul.f32 %v1556, %v1558
        %v1560 = vadd.f32 %v1559, -0.16666654
        %v1561 = vmul.f32 %v1556, %v1560
        %v1562 = vadd.f32 %v1561, 1.0
        %v1563 = vmul.f32 %v1562, %v1547
        %vm1564 = vweird.f32 %v335
        %v1565 = vadd.s32 %v1548, 3
        %v1566 = vand.u32 %v1565, 3
        %vm1567 = vcmp.lt.s32.totalorder %v1566, 2
        %vm1568 = vcmp.eq.s32.totalorder %v1566, 0
        %v1569 = vxor.u32 %v1563, 2147483648
        %v1570 = vsel %vm1568, %v1555, %v1569
        %vm1571 = vcmp.eq.s32.totalorder %v1566, 2
        %v1572 = vxor.u32 %v1555, 2147483648
        %v1573 = vsel %vm1571, %v1572, %v1563
        %v1574 = vsel %vm1567, %v1570, %v1573
        %v1575 = vsel %vm1564, nan, %v1574
        %v1576 = vld [vmem:[%s2] sm:$0xff]
        %v1577 = vld [vmem:[%s2 + $0x8] sm:$0xff]
        %v1578 = vld [vmem:[%s2 + $0x10] sm:$0xff]
        %v1579 = vld [vmem:[%s2 + $0x18] sm:$0xff]
        %v1580 = vld [vmem:[%s4 + $0x20] sm:$0xff]
        %v1581 = vld [vmem:[%s4 + $0x28] sm:$0xff]
        %v1582 = vld [vmem:[%s4 + $0x30] sm:$0xff]
        %v1583 = vld [vmem:[%s4 + $0x38] sm:$0xff]
        %1585 = vset.pattern.permute.xlu0 0
        %1586 = vperm.xlu0 %1585, %v1580
        %v1587 = vpop.permute.xlu0 %1586
        %1590 = vset.pattern.permute.xlu0 0
        %1591 = vperm.xlu0 %1590, %v1581
        %v1592 = vpop.permute.xlu0 %1591
        %1595 = vset.pattern.permute.xlu0 0
        %1596 = vperm.xlu0 %1595, %v1582
        %v1597 = vpop.permute.xlu0 %1596
        %1600 = vset.pattern.permute.xlu0 0
        %1601 = vperm.xlu0 %1600, %v1583
        %v1602 = vpop.permute.xlu0 %1601
        %vm1604 = vcmask 261120
        %v1606 = vsel %vm1604, %v1576, 0
        %v1609 = vsel %vm1604, %v1577, 0
        %v1612 = vsel %vm1604, %v1578, 0
        %v1615 = vsel %vm1604, %v1579, 0
        %1617 = vmatpush.msra.mxu0 0.0
        %1618 = vmatpush.msra.mxu0 0.0
        %1619 = vmatpush.msra.mxu0 0.0
        %1620 = vmatpush.msra.mxu0 0.0
        %1621 = vmatpush.msra.mxu0 0.0
        %1622 = vmatpush.msra.mxu0 0.0
        %1623 = vmatpush.msra.mxu0 0.0
        %1624 = vmatpush.msra.mxu0 0.0
        %1625 = vmatpush.msra.mxu0 0.0
        %1626 = vmatpush.msra.mxu0 0.0
        %1627 = vmatpush.msra.mxu0 0.0
        %1628 = vmatpush.msra.mxu0 0.0
        %1629 = vmatpush.msra.mxu0 %v1420
        %1630 = vmatpush.msra.mxu0 %v1110
        %1631 = vmatpush.msra.mxu0 %v800
        %1632 = vmatpush.msra.mxu0 %v490
        %1633 = vmatmul.f32.gmra.mxu0 %v1606
        %v1634 = vpop.f32.mrf.mxu0
        %v1635 = vadd.f32 %v1587, %v1634
        %1636 = vmatmul.f32.gmra.mxu0 %v1609
        %v1637 = vpop.f32.mrf.mxu0
        %v1638 = vadd.f32 %v1592, %v1637
        %1639 = vmatmul.f32.gmra.mxu0 %v1612
        %v1640 = vpop.f32.mrf.mxu0
        %v1641 = vadd.f32 %v1597, %v1640
        %1642 = vmatmul.f32.gmra.mxu0 %v1615
        %v1643 = vpop.f32.mrf.mxu0
        %v1644 = vadd.f32 %v1602, %v1643
        %1645 = vdwg.mxu0
        %1646 = vmatpush.msra.mxu0 0.0
        %1647 = vmatpush.msra.mxu0 0.0
        %1648 = vmatpush.msra.mxu0 0.0
        %1649 = vmatpush.msra.mxu0 0.0
        %1650 = vmatpush.msra.mxu0 0.0
        %1651 = vmatpush.msra.mxu0 0.0
        %1652 = vmatpush.msra.mxu0 0.0
        %1653 = vmatpush.msra.mxu0 0.0
        %1654 = vmatpush.msra.mxu0 0.0
        %1655 = vmatpush.msra.mxu0 0.0
        %1656 = vmatpush.msra.mxu0 0.0
        %1657 = vmatpush.msra.mxu0 0.0
        %1658 = vmatpush.msra.mxu0 %v1575
        %1659 = vmatpush.msra.mxu0 %v1265
        %1660 = vmatpush.msra.mxu0 %v955
        %1661 = vmatpush.msra.mxu0 %v645
        %1662 = vmatmul.f32.gmra.mxu0 %v1606
        %v1663 = vpop.f32.mrf.mxu0
        %v1664 = vadd.f32 %v1587, %v1663
        %1665 = vmatmul.f32.gmra.mxu0 %v1609
        %v1666 = vpop.f32.mrf.mxu0
        %v1667 = vadd.f32 %v1592, %v1666
        %1668 = vmatmul.f32.gmra.mxu0 %v1612
        %v1669 = vpop.f32.mrf.mxu0
        %v1670 = vadd.f32 %v1597, %v1669
        %1671 = vmatmul.f32.gmra.mxu0 %v1615
        %v1672 = vpop.f32.mrf.mxu0
        %v1673 = vadd.f32 %v1602, %v1672
        %1674 = vdwg.mxu0
        %v1675 = vand.u32 2147483647, %v1635
        %vm1676 = vcmp.le.f32.partialorder %v1675, 0.7853982
        %vm1677 = vcmp.lt.s32.totalorder %v1635, 0
        %v1678 = vand.u32 %v1635, 2139095040
        %v1679 = vshrl.u32 %v1678, 23
        %v1680 = vsub.s32 %v1679, 127
        %v1681 = vand.u32 2147483647, %v1635
        %v1682 = vand.u32 %v1681, 8388607
        %v1683 = vor.u32 %v1682, 8388608
        %v1684 = vsub.s32 0, %v1683
        %v1685 = vadd.s32 %v1680, 1
        %vm1686 = vcmp.gt.s32.totalorder %v1685, 0
        %v1687 = vsel %vm1686, %v1685, 0
        %v1688 = vshrl.u32 %v1687, 5
        %v1689 = vand.u32 %v1687, 31
        %v1690 = vsub.s32 32, %v1689
        %v1691 = vshrl.u32 683565275, %v1690
        %v1692 = vshll.u32 683565275, %v1689
        %v1693 = vshrl.u32 2475754826, %v1690
        %v1694 = vor.u32 %v1692, %v1693
        %v1695 = vshll.u32 2475754826, %v1689
        %v1696 = vshrl.u32 2131351028, %v1690
        %v1697 = vor.u32 %v1695, %v1696
        %v1698 = vshll.u32 2131351028, %v1689
        %v1699 = vshrl.u32 2102212464, %v1690
        %v1700 = vor.u32 %v1698, %v1699
        %v1701 = vshll.u32 2102212464, %v1689
        %v1702 = vshrl.u32 920167782, %v1690
        %v1703 = vor.u32 %v1701, %v1702
        %v1704 = vshll.u32 920167782, %v1689
        %v1705 = vshrl.u32 1326507024, %v1690
        %v1706 = vor.u32 %v1704, %v1705
        %vm1707 = vcmp.lt.s32.totalorder %v1688, 1
        %vm1708 = vcmp.lt.s32.totalorder %v1688, 2
        %vm1709 = vcmp.lt.s32.totalorder %v1688, 3
        %vm1710 = vcmp.lt.s32.totalorder %v1688, 4
        %v1711 = vsel %vm1707, %v1691, %v1694
        %v1712 = vsel %vm1710, %v1700, 2102212464
        %v1713 = vsel %vm1709, %v1697, %v1712
        %v1714 = vsel %vm1708, %v1711, %v1713
        %v1715 = vsel %vm1707, %v1694, %v1697
        %v1716 = vsel %vm1710, %v1703, 920167782
        %v1717 = vsel %vm1709, %v1700, %v1716
        %v1718 = vsel %vm1708, %v1715, %v1717
        %v1719 = vsel %vm1707, %v1697, %v1700
        %v1720 = vsel %vm1710, %v1706, 1326507024
        %v1721 = vsel %vm1709, %v1703, %v1720
        %v1722 = vsel %vm1708, %v1719, %v1721
        %v1723 = vshll.u32 %v1683, 8
        %v1724 = vand.u32 %v1723, 65535
        %v1725 = vshrl.u32 %v1723, 16
        %v1726 = vand.u32 %v1722, 65535
        %v1727 = vshrl.u32 %v1722, 16
        %v1728 = vmul.u32 %v1724, %v1726
        %v1729 = vmul.u32 %v1724, %v1727
        %v1730 = vmul.u32 %v1725, %v1726
        %v1731 = vmul.u32 %v1725, %v1727
        %v1732 = vshll.u32 %v1729, 16
        %v1733 = vshrl.u32 %v1729, 16
        %v1734 = vshll.u32 %v1730, 16
        %v1735 = vshrl.u32 %v1730, 16
        %vm1736 = vc.u32 %v1728, %v1732
        %v1737 = vsel %vm1736, 1, 0
        %v1738 = vadd.s32 %v1728, %v1732
        %v1739 = vadd.s32 %v1731, %v1737
        %vm1740 = vc.u32 %v1738, %v1734
        %v1741 = vsel %vm1740, 1, 0
        %v1742 = vadd.s32 %v1738, %v1734
        %v1743 = vadd.s32 %v1739, %v1741
        %v1744 = vadd.s32 %v1743, %v1733
        %v1745 = vadd.s32 %v1744, %v1735
        %v1746 = vand.u32 %v1723, 65535
        %v1747 = vshrl.u32 %v1723, 16
        %v1748 = vand.u32 %v1718, 65535
        %v1749 = vshrl.u32 %v1718, 16
        %v1750 = vmul.u32 %v1746, %v1748
        %v1751 = vmul.u32 %v1746, %v1749
        %v1752 = vmul.u32 %v1747, %v1748
        %v1753 = vmul.u32 %v1747, %v1749
        %v1754 = vshll.u32 %v1751, 16
        %v1755 = vshrl.u32 %v1751, 16
        %v1756 = vshll.u32 %v1752, 16
        %v1757 = vshrl.u32 %v1752, 16
        %vm1758 = vc.u32 %v1750, %v1754
        %v1759 = vsel %vm1758, 1, 0
        %v1760 = vadd.s32 %v1750, %v1754
        %v1761 = vadd.s32 %v1753, %v1759
        %vm1762 = vc.u32 %v1760, %v1756
        %v1763 = vsel %vm1762, 1, 0
        %v1764 = vadd.s32 %v1760, %v1756
        %v1765 = vadd.s32 %v1761, %v1763
        %v1766 = vadd.s32 %v1765, %v1755
        %v1767 = vadd.s32 %v1766, %v1757
        %v1768 = vmul.u32 %v1723, %v1714
        %v1769 = vadd.s32 %v1745, %v1764
        %vm1770 = vc.u32 %v1745, %v1764
        %v1771 = vadd.s32 %v1767, 1
        %v1772 = vsel %vm1770, %v1771, %v1767
        %v1773 = vadd.s32 %v1768, %v1772
        %v1774 = vadd.s32 %v1773, 536870912
        %v1775 = vshrl.u32 %v1774, 30
        %v1776 = vshll.u32 %v1775, 30
        %v1777 = vsub.s32 %v1773, %v1776
        %vm1778 = vcmp.lt.s32.totalorder %v1777, 0
        %v1779 = vsub.s32 0, %v1777
        %v1780 = vsel %vm1778, %v1779, %v1777
        %v1781 = vclz %v1780
        %v1782 = vsub.s32 %v1781, 2
        %vm1783 = vcmp.gt.s32.totalorder 0, %v1782
        %v1784 = vsel %vm1783, 0, %v1782
        %v1785 = vsub.s32 32, %v1784
        %v1786 = vshll.u32 %v1777, %v1784
        %v1787 = vshrl.u32 %v1769, %v1785
        %v1788 = vor.u32 %v1786, %v1787
        %v1789 = vsub.s32 4294967266, %v1784
        %v1790 = vadd.s32 %v1789, 127
        %v1791 = vshll.u32 %v1790, 23
        %v1792 = vor.u32 4788187, %v1791
        %v1793 = vand.u32 2147483647, %v1792
        %v1795 = vcvt.s32.f32 %v1788
        %v1796 = vmul.f32 %v1795, %v1793
        %v1797 = vxor.u32 %v1796, 2147483648
        %v1798 = vsel %vm1677, %v1797, %v1796
        %v1799 = vsub.s32 4, %v1775
        %v1800 = vsel %vm1677, %v1799, %v1775
        %v1801 = vsel %vm1676, %v1635, %v1798
        %v1802 = vsel %vm1676, 0, %v1800
        %v1803 = vmul.f32 %v1801, %v1801
        %v1804 = vmul.f32 %v1803, -0.001358992
        %v1805 = vadd.f32 %v1804, 0.041655596
        %v1806 = vmul.f32 %v1803, %v1805
        %v1807 = vadd.f32 %v1806, -0.4999988
        %v1808 = vmul.f32 %v1803, %v1807
        %v1809 = vadd.f32 1.0, %v1808
        %v1810 = vmul.f32 %v1801, %v1801
        %v1811 = vmul.f32 %v1810, -0.00019511016
        %v1812 = vadd.f32 %v1811, 0.008332121
        %v1813 = vmul.f32 %v1810, %v1812
        %v1814 = vadd.f32 %v1813, -0.16666654
        %v1815 = vmul.f32 %v1810, %v1814
        %v1816 = vadd.f32 %v1815, 1.0
        %v1817 = vmul.f32 %v1816, %v1801
        %vm1818 = vweird.f32 %v1635
        %v1819 = vadd.s32 %v1802, 3
        %v1820 = vand.u32 %v1819, 3
        %vm1821 = vcmp.lt.s32.totalorder %v1820, 2
        %vm1822 = vcmp.eq.s32.totalorder %v1820, 0
        %v1823 = vxor.u32 %v1817, 2147483648
        %v1824 = vsel %vm1822, %v1809, %v1823
        %vm1825 = vcmp.eq.s32.totalorder %v1820, 2
        %v1826 = vxor.u32 %v1809, 2147483648
        %v1827 = vsel %vm1825, %v1826, %v1817
        %v1828 = vsel %vm1821, %v1824, %v1827
        %v1829 = vsel %vm1818, nan, %v1828
        %v1830 = vand.u32 2147483647, %v1664
        %vm1831 = vcmp.le.f32.partialorder %v1830, 0.7853982
        %vm1832 = vcmp.lt.s32.totalorder %v1664, 0
        %v1833 = vand.u32 %v1664, 2139095040
        %v1834 = vshrl.u32 %v1833, 23
        %v1835 = vsub.s32 %v1834, 127
        %v1836 = vand.u32 2147483647, %v1664
        %v1837 = vand.u32 %v1836, 8388607
        %v1838 = vor.u32 %v1837, 8388608
        %v1839 = vsub.s32 0, %v1838
        %v1840 = vadd.s32 %v1835, 1
        %vm1841 = vcmp.gt.s32.totalorder %v1840, 0
        %v1842 = vsel %vm1841, %v1840, 0
        %v1843 = vshrl.u32 %v1842, 5
        %v1844 = vand.u32 %v1842, 31
        %v1845 = vsub.s32 32, %v1844
        %v1846 = vshrl.u32 683565275, %v1845
        %v1847 = vshll.u32 683565275, %v1844
        %v1848 = vshrl.u32 2475754826, %v1845
        %v1849 = vor.u32 %v1847, %v1848
        %v1850 = vshll.u32 2475754826, %v1844
        %v1851 = vshrl.u32 2131351028, %v1845
        %v1852 = vor.u32 %v1850, %v1851
        %v1853 = vshll.u32 2131351028, %v1844
        %v1854 = vshrl.u32 2102212464, %v1845
        %v1855 = vor.u32 %v1853, %v1854
        %v1856 = vshll.u32 2102212464, %v1844
        %v1857 = vshrl.u32 920167782, %v1845
        %v1858 = vor.u32 %v1856, %v1857
        %v1859 = vshll.u32 920167782, %v1844
        %v1860 = vshrl.u32 1326507024, %v1845
        %v1861 = vor.u32 %v1859, %v1860
        %vm1862 = vcmp.lt.s32.totalorder %v1843, 1
        %vm1863 = vcmp.lt.s32.totalorder %v1843, 2
        %vm1864 = vcmp.lt.s32.totalorder %v1843, 3
        %vm1865 = vcmp.lt.s32.totalorder %v1843, 4
        %v1866 = vsel %vm1862, %v1846, %v1849
        %v1867 = vsel %vm1865, %v1855, 2102212464
        %v1868 = vsel %vm1864, %v1852, %v1867
        %v1869 = vsel %vm1863, %v1866, %v1868
        %v1870 = vsel %vm1862, %v1849, %v1852
        %v1871 = vsel %vm1865, %v1858, 920167782
        %v1872 = vsel %vm1864, %v1855, %v1871
        %v1873 = vsel %vm1863, %v1870, %v1872
        %v1874 = vsel %vm1862, %v1852, %v1855
        %v1875 = vsel %vm1865, %v1861, 1326507024
        %v1876 = vsel %vm1864, %v1858, %v1875
        %v1877 = vsel %vm1863, %v1874, %v1876
        %v1878 = vshll.u32 %v1838, 8
        %v1879 = vand.u32 %v1878, 65535
        %v1880 = vshrl.u32 %v1878, 16
        %v1881 = vand.u32 %v1877, 65535
        %v1882 = vshrl.u32 %v1877, 16
        %v1883 = vmul.u32 %v1879, %v1881
        %v1884 = vmul.u32 %v1879, %v1882
        %v1885 = vmul.u32 %v1880, %v1881
        %v1886 = vmul.u32 %v1880, %v1882
        %v1887 = vshll.u32 %v1884, 16
        %v1888 = vshrl.u32 %v1884, 16
        %v1889 = vshll.u32 %v1885, 16
        %v1890 = vshrl.u32 %v1885, 16
        %vm1891 = vc.u32 %v1883, %v1887
        %v1892 = vsel %vm1891, 1, 0
        %v1893 = vadd.s32 %v1883, %v1887
        %v1894 = vadd.s32 %v1886, %v1892
        %vm1895 = vc.u32 %v1893, %v1889
        %v1896 = vsel %vm1895, 1, 0
        %v1897 = vadd.s32 %v1893, %v1889
        %v1898 = vadd.s32 %v1894, %v1896
        %v1899 = vadd.s32 %v1898, %v1888
        %v1900 = vadd.s32 %v1899, %v1890
        %v1901 = vand.u32 %v1878, 65535
        %v1902 = vshrl.u32 %v1878, 16
        %v1903 = vand.u32 %v1873, 65535
        %v1904 = vshrl.u32 %v1873, 16
        %v1905 = vmul.u32 %v1901, %v1903
        %v1906 = vmul.u32 %v1901, %v1904
        %v1907 = vmul.u32 %v1902, %v1903
        %v1908 = vmul.u32 %v1902, %v1904
        %v1909 = vshll.u32 %v1906, 16
        %v1910 = vshrl.u32 %v1906, 16
        %v1911 = vshll.u32 %v1907, 16
        %v1912 = vshrl.u32 %v1907, 16
        %vm1913 = vc.u32 %v1905, %v1909
        %v1914 = vsel %vm1913, 1, 0
        %v1915 = vadd.s32 %v1905, %v1909
        %v1916 = vadd.s32 %v1908, %v1914
        %vm1917 = vc.u32 %v1915, %v1911
        %v1918 = vsel %vm1917, 1, 0
        %v1919 = vadd.s32 %v1915, %v1911
        %v1920 = vadd.s32 %v1916, %v1918
        %v1921 = vadd.s32 %v1920, %v1910
        %v1922 = vadd.s32 %v1921, %v1912
        %v1923 = vmul.u32 %v1878, %v1869
        %v1924 = vadd.s32 %v1900, %v1919
        %vm1925 = vc.u32 %v1900, %v1919
        %v1926 = vadd.s32 %v1922, 1
        %v1927 = vsel %vm1925, %v1926, %v1922
        %v1928 = vadd.s32 %v1923, %v1927
        %v1929 = vadd.s32 %v1928, 536870912
        %v1930 = vshrl.u32 %v1929, 30
        %v1931 = vshll.u32 %v1930, 30
        %v1932 = vsub.s32 %v1928, %v1931
        %vm1933 = vcmp.lt.s32.totalorder %v1932, 0
        %v1934 = vsub.s32 0, %v1932
        %v1935 = vsel %vm1933, %v1934, %v1932
        %v1936 = vclz %v1935
        %v1937 = vsub.s32 %v1936, 2
        %vm1938 = vcmp.gt.s32.totalorder 0, %v1937
        %v1939 = vsel %vm1938, 0, %v1937
        %v1940 = vsub.s32 32, %v1939
        %v1941 = vshll.u32 %v1932, %v1939
        %v1942 = vshrl.u32 %v1924, %v1940
        %v1943 = vor.u32 %v1941, %v1942
        %v1944 = vsub.s32 4294967266, %v1939
        %v1945 = vadd.s32 %v1944, 127
        %v1946 = vshll.u32 %v1945, 23
        %v1947 = vor.u32 4788187, %v1946
        %v1948 = vand.u32 2147483647, %v1947
        %v1950 = vcvt.s32.f32 %v1943
        %v1951 = vmul.f32 %v1950, %v1948
        %v1952 = vxor.u32 %v1951, 2147483648
        %v1953 = vsel %vm1832, %v1952, %v1951
        %v1954 = vsub.s32 4, %v1930
        %v1955 = vsel %vm1832, %v1954, %v1930
        %v1956 = vsel %vm1831, %v1664, %v1953
        %v1957 = vsel %vm1831, 0, %v1955
        %v1958 = vmul.f32 %v1956, %v1956
        %v1959 = vmul.f32 %v1958, -0.001358992
        %v1960 = vadd.f32 %v1959, 0.041655596
        %v1961 = vmul.f32 %v1958, %v1960
        %v1962 = vadd.f32 %v1961, -0.4999988
        %v1963 = vmul.f32 %v1958, %v1962
        %v1964 = vadd.f32 1.0, %v1963
        %v1965 = vmul.f32 %v1956, %v1956
        %v1966 = vmul.f32 %v1965, -0.00019511016
        %v1967 = vadd.f32 %v1966, 0.008332121
        %v1968 = vmul.f32 %v1965, %v1967
        %v1969 = vadd.f32 %v1968, -0.16666654
        %v1970 = vmul.f32 %v1965, %v1969
        %v1971 = vadd.f32 %v1970, 1.0
        %v1972 = vmul.f32 %v1971, %v1956
        %vm1973 = vweird.f32 %v1664
        %v1974 = vadd.s32 %v1957, 3
        %v1975 = vand.u32 %v1974, 3
        %vm1976 = vcmp.lt.s32.totalorder %v1975, 2
        %vm1977 = vcmp.eq.s32.totalorder %v1975, 0
        %v1978 = vxor.u32 %v1972, 2147483648
        %v1979 = vsel %vm1977, %v1964, %v1978
        %vm1980 = vcmp.eq.s32.totalorder %v1975, 2
        %v1981 = vxor.u32 %v1964, 2147483648
        %v1982 = vsel %vm1980, %v1981, %v1972
        %v1983 = vsel %vm1976, %v1979, %v1982
        %v1984 = vsel %vm1973, nan, %v1983
        %v1985 = vand.u32 2147483647, %v1638
        %vm1986 = vcmp.le.f32.partialorder %v1985, 0.7853982
        %vm1987 = vcmp.lt.s32.totalorder %v1638, 0
        %v1988 = vand.u32 %v1638, 2139095040
        %v1989 = vshrl.u32 %v1988, 23
        %v1990 = vsub.s32 %v1989, 127
        %v1991 = vand.u32 2147483647, %v1638
        %v1992 = vand.u32 %v1991, 8388607
        %v1993 = vor.u32 %v1992, 8388608
        %v1994 = vsub.s32 0, %v1993
        %v1995 = vadd.s32 %v1990, 1
        %vm1996 = vcmp.gt.s32.totalorder %v1995, 0
        %v1997 = vsel %vm1996, %v1995, 0
        %v1998 = vshrl.u32 %v1997, 5
        %v1999 = vand.u32 %v1997, 31
        %v2000 = vsub.s32 32, %v1999
        %v2001 = vshrl.u32 683565275, %v2000
        %v2002 = vshll.u32 683565275, %v1999
        %v2003 = vshrl.u32 2475754826, %v2000
        %v2004 = vor.u32 %v2002, %v2003
        %v2005 = vshll.u32 2475754826, %v1999
        %v2006 = vshrl.u32 2131351028, %v2000
        %v2007 = vor.u32 %v2005, %v2006
        %v2008 = vshll.u32 2131351028, %v1999
        %v2009 = vshrl.u32 2102212464, %v2000
        %v2010 = vor.u32 %v2008, %v2009
        %v2011 = vshll.u32 2102212464, %v1999
        %v2012 = vshrl.u32 920167782, %v2000
        %v2013 = vor.u32 %v2011, %v2012
        %v2014 = vshll.u32 920167782, %v1999
        %v2015 = vshrl.u32 1326507024, %v2000
        %v2016 = vor.u32 %v2014, %v2015
        %vm2017 = vcmp.lt.s32.totalorder %v1998, 1
        %vm2018 = vcmp.lt.s32.totalorder %v1998, 2
        %vm2019 = vcmp.lt.s32.totalorder %v1998, 3
        %vm2020 = vcmp.lt.s32.totalorder %v1998, 4
        %v2021 = vsel %vm2017, %v2001, %v2004
        %v2022 = vsel %vm2020, %v2010, 2102212464
        %v2023 = vsel %vm2019, %v2007, %v2022
        %v2024 = vsel %vm2018, %v2021, %v2023
        %v2025 = vsel %vm2017, %v2004, %v2007
        %v2026 = vsel %vm2020, %v2013, 920167782
        %v2027 = vsel %vm2019, %v2010, %v2026
        %v2028 = vsel %vm2018, %v2025, %v2027
        %v2029 = vsel %vm2017, %v2007, %v2010
        %v2030 = vsel %vm2020, %v2016, 1326507024
        %v2031 = vsel %vm2019, %v2013, %v2030
        %v2032 = vsel %vm2018, %v2029, %v2031
        %v2033 = vshll.u32 %v1993, 8
        %v2034 = vand.u32 %v2033, 65535
        %v2035 = vshrl.u32 %v2033, 16
        %v2036 = vand.u32 %v2032, 65535
        %v2037 = vshrl.u32 %v2032, 16
        %v2038 = vmul.u32 %v2034, %v2036
        %v2039 = vmul.u32 %v2034, %v2037
        %v2040 = vmul.u32 %v2035, %v2036
        %v2041 = vmul.u32 %v2035, %v2037
        %v2042 = vshll.u32 %v2039, 16
        %v2043 = vshrl.u32 %v2039, 16
        %v2044 = vshll.u32 %v2040, 16
        %v2045 = vshrl.u32 %v2040, 16
        %vm2046 = vc.u32 %v2038, %v2042
        %v2047 = vsel %vm2046, 1, 0
        %v2048 = vadd.s32 %v2038, %v2042
        %v2049 = vadd.s32 %v2041, %v2047
        %vm2050 = vc.u32 %v2048, %v2044
        %v2051 = vsel %vm2050, 1, 0
        %v2052 = vadd.s32 %v2048, %v2044
        %v2053 = vadd.s32 %v2049, %v2051
        %v2054 = vadd.s32 %v2053, %v2043
        %v2055 = vadd.s32 %v2054, %v2045
        %v2056 = vand.u32 %v2033, 65535
        %v2057 = vshrl.u32 %v2033, 16
        %v2058 = vand.u32 %v2028, 65535
        %v2059 = vshrl.u32 %v2028, 16
        %v2060 = vmul.u32 %v2056, %v2058
        %v2061 = vmul.u32 %v2056, %v2059
        %v2062 = vmul.u32 %v2057, %v2058
        %v2063 = vmul.u32 %v2057, %v2059
        %v2064 = vshll.u32 %v2061, 16
        %v2065 = vshrl.u32 %v2061, 16
        %v2066 = vshll.u32 %v2062, 16
        %v2067 = vshrl.u32 %v2062, 16
        %vm2068 = vc.u32 %v2060, %v2064
        %v2069 = vsel %vm2068, 1, 0
        %v2070 = vadd.s32 %v2060, %v2064
        %v2071 = vadd.s32 %v2063, %v2069
        %vm2072 = vc.u32 %v2070, %v2066
        %v2073 = vsel %vm2072, 1, 0
        %v2074 = vadd.s32 %v2070, %v2066
        %v2075 = vadd.s32 %v2071, %v2073
        %v2076 = vadd.s32 %v2075, %v2065
        %v2077 = vadd.s32 %v2076, %v2067
        %v2078 = vmul.u32 %v2033, %v2024
        %v2079 = vadd.s32 %v2055, %v2074
        %vm2080 = vc.u32 %v2055, %v2074
        %v2081 = vadd.s32 %v2077, 1
        %v2082 = vsel %vm2080, %v2081, %v2077
        %v2083 = vadd.s32 %v2078, %v2082
        %v2084 = vadd.s32 %v2083, 536870912
        %v2085 = vshrl.u32 %v2084, 30
        %v2086 = vshll.u32 %v2085, 30
        %v2087 = vsub.s32 %v2083, %v2086
        %vm2088 = vcmp.lt.s32.totalorder %v2087, 0
        %v2089 = vsub.s32 0, %v2087
        %v2090 = vsel %vm2088, %v2089, %v2087
        %v2091 = vclz %v2090
        %v2092 = vsub.s32 %v2091, 2
        %vm2093 = vcmp.gt.s32.totalorder 0, %v2092
        %v2094 = vsel %vm2093, 0, %v2092
        %v2095 = vsub.s32 32, %v2094
        %v2096 = vshll.u32 %v2087, %v2094
        %v2097 = vshrl.u32 %v2079, %v2095
        %v2098 = vor.u32 %v2096, %v2097
        %v2099 = vsub.s32 4294967266, %v2094
        %v2100 = vadd.s32 %v2099, 127
        %v2101 = vshll.u32 %v2100, 23
        %v2102 = vor.u32 4788187, %v2101
        %v2103 = vand.u32 2147483647, %v2102
        %v2105 = vcvt.s32.f32 %v2098
        %v2106 = vmul.f32 %v2105, %v2103
        %v2107 = vxor.u32 %v2106, 2147483648
        %v2108 = vsel %vm1987, %v2107, %v2106
        %v2109 = vsub.s32 4, %v2085
        %v2110 = vsel %vm1987, %v2109, %v2085
        %v2111 = vsel %vm1986, %v1638, %v2108
        %v2112 = vsel %vm1986, 0, %v2110
        %v2113 = vmul.f32 %v2111, %v2111
        %v2114 = vmul.f32 %v2113, -0.001358992
        %v2115 = vadd.f32 %v2114, 0.041655596
        %v2116 = vmul.f32 %v2113, %v2115
        %v2117 = vadd.f32 %v2116, -0.4999988
        %v2118 = vmul.f32 %v2113, %v2117
        %v2119 = vadd.f32 1.0, %v2118
        %v2120 = vmul.f32 %v2111, %v2111
        %v2121 = vmul.f32 %v2120, -0.00019511016
        %v2122 = vadd.f32 %v2121, 0.008332121
        %v2123 = vmul.f32 %v2120, %v2122
        %v2124 = vadd.f32 %v2123, -0.16666654
        %v2125 = vmul.f32 %v2120, %v2124
        %v2126 = vadd.f32 %v2125, 1.0
        %v2127 = vmul.f32 %v2126, %v2111
        %vm2128 = vweird.f32 %v1638
        %v2129 = vadd.s32 %v2112, 3
        %v2130 = vand.u32 %v2129, 3
        %vm2131 = vcmp.lt.s32.totalorder %v2130, 2
        %vm2132 = vcmp.eq.s32.totalorder %v2130, 0
        %v2133 = vxor.u32 %v2127, 2147483648
        %v2134 = vsel %vm2132, %v2119, %v2133
        %vm2135 = vcmp.eq.s32.totalorder %v2130, 2
        %v2136 = vxor.u32 %v2119, 2147483648
        %v2137 = vsel %vm2135, %v2136, %v2127
        %v2138 = vsel %vm2131, %v2134, %v2137
        %v2139 = vsel %vm2128, nan, %v2138
        %v2140 = vand.u32 2147483647, %v1667
        %vm2141 = vcmp.le.f32.partialorder %v2140, 0.7853982
        %vm2142 = vcmp.lt.s32.totalorder %v1667, 0
        %v2143 = vand.u32 %v1667, 2139095040
        %v2144 = vshrl.u32 %v2143, 23
        %v2145 = vsub.s32 %v2144, 127
        %v2146 = vand.u32 2147483647, %v1667
        %v2147 = vand.u32 %v2146, 8388607
        %v2148 = vor.u32 %v2147, 8388608
        %v2149 = vsub.s32 0, %v2148
        %v2150 = vadd.s32 %v2145, 1
        %vm2151 = vcmp.gt.s32.totalorder %v2150, 0
        %v2152 = vsel %vm2151, %v2150, 0
        %v2153 = vshrl.u32 %v2152, 5
        %v2154 = vand.u32 %v2152, 31
        %v2155 = vsub.s32 32, %v2154
        %v2156 = vshrl.u32 683565275, %v2155
        %v2157 = vshll.u32 683565275, %v2154
        %v2158 = vshrl.u32 2475754826, %v2155
        %v2159 = vor.u32 %v2157, %v2158
        %v2160 = vshll.u32 2475754826, %v2154
        %v2161 = vshrl.u32 2131351028, %v2155
        %v2162 = vor.u32 %v2160, %v2161
        %v2163 = vshll.u32 2131351028, %v2154
        %v2164 = vshrl.u32 2102212464, %v2155
        %v2165 = vor.u32 %v2163, %v2164
        %v2166 = vshll.u32 2102212464, %v2154
        %v2167 = vshrl.u32 920167782, %v2155
        %v2168 = vor.u32 %v2166, %v2167
        %v2169 = vshll.u32 920167782, %v2154
        %v2170 = vshrl.u32 1326507024, %v2155
        %v2171 = vor.u32 %v2169, %v2170
        %vm2172 = vcmp.lt.s32.totalorder %v2153, 1
        %vm2173 = vcmp.lt.s32.totalorder %v2153, 2
        %vm2174 = vcmp.lt.s32.totalorder %v2153, 3
        %vm2175 = vcmp.lt.s32.totalorder %v2153, 4
        %v2176 = vsel %vm2172, %v2156, %v2159
        %v2177 = vsel %vm2175, %v2165, 2102212464
        %v2178 = vsel %vm2174, %v2162, %v2177
        %v2179 = vsel %vm2173, %v2176, %v2178
        %v2180 = vsel %vm2172, %v2159, %v2162
        %v2181 = vsel %vm2175, %v2168, 920167782
        %v2182 = vsel %vm2174, %v2165, %v2181
        %v2183 = vsel %vm2173, %v2180, %v2182
        %v2184 = vsel %vm2172, %v2162, %v2165
        %v2185 = vsel %vm2175, %v2171, 1326507024
        %v2186 = vsel %vm2174, %v2168, %v2185
        %v2187 = vsel %vm2173, %v2184, %v2186
        %v2188 = vshll.u32 %v2148, 8
        %v2189 = vand.u32 %v2188, 65535
        %v2190 = vshrl.u32 %v2188, 16
        %v2191 = vand.u32 %v2187, 65535
        %v2192 = vshrl.u32 %v2187, 16
        %v2193 = vmul.u32 %v2189, %v2191
        %v2194 = vmul.u32 %v2189, %v2192
        %v2195 = vmul.u32 %v2190, %v2191
        %v2196 = vmul.u32 %v2190, %v2192
        %v2197 = vshll.u32 %v2194, 16
        %v2198 = vshrl.u32 %v2194, 16
        %v2199 = vshll.u32 %v2195, 16
        %v2200 = vshrl.u32 %v2195, 16
        %vm2201 = vc.u32 %v2193, %v2197
        %v2202 = vsel %vm2201, 1, 0
        %v2203 = vadd.s32 %v2193, %v2197
        %v2204 = vadd.s32 %v2196, %v2202
        %vm2205 = vc.u32 %v2203, %v2199
        %v2206 = vsel %vm2205, 1, 0
        %v2207 = vadd.s32 %v2203, %v2199
        %v2208 = vadd.s32 %v2204, %v2206
        %v2209 = vadd.s32 %v2208, %v2198
        %v2210 = vadd.s32 %v2209, %v2200
        %v2211 = vand.u32 %v2188, 65535
        %v2212 = vshrl.u32 %v2188, 16
        %v2213 = vand.u32 %v2183, 65535
        %v2214 = vshrl.u32 %v2183, 16
        %v2215 = vmul.u32 %v2211, %v2213
        %v2216 = vmul.u32 %v2211, %v2214
        %v2217 = vmul.u32 %v2212, %v2213
        %v2218 = vmul.u32 %v2212, %v2214
        %v2219 = vshll.u32 %v2216, 16
        %v2220 = vshrl.u32 %v2216, 16
        %v2221 = vshll.u32 %v2217, 16
        %v2222 = vshrl.u32 %v2217, 16
        %vm2223 = vc.u32 %v2215, %v2219
        %v2224 = vsel %vm2223, 1, 0
        %v2225 = vadd.s32 %v2215, %v2219
        %v2226 = vadd.s32 %v2218, %v2224
        %vm2227 = vc.u32 %v2225, %v2221
        %v2228 = vsel %vm2227, 1, 0
        %v2229 = vadd.s32 %v2225, %v2221
        %v2230 = vadd.s32 %v2226, %v2228
        %v2231 = vadd.s32 %v2230, %v2220
        %v2232 = vadd.s32 %v2231, %v2222
        %v2233 = vmul.u32 %v2188, %v2179
        %v2234 = vadd.s32 %v2210, %v2229
        %vm2235 = vc.u32 %v2210, %v2229
        %v2236 = vadd.s32 %v2232, 1
        %v2237 = vsel %vm2235, %v2236, %v2232
        %v2238 = vadd.s32 %v2233, %v2237
        %v2239 = vadd.s32 %v2238, 536870912
        %v2240 = vshrl.u32 %v2239, 30
        %v2241 = vshll.u32 %v2240, 30
        %v2242 = vsub.s32 %v2238, %v2241
        %vm2243 = vcmp.lt.s32.totalorder %v2242, 0
        %v2244 = vsub.s32 0, %v2242
        %v2245 = vsel %vm2243, %v2244, %v2242
        %v2246 = vclz %v2245
        %v2247 = vsub.s32 %v2246, 2
        %vm2248 = vcmp.gt.s32.totalorder 0, %v2247
        %v2249 = vsel %vm2248, 0, %v2247
        %v2250 = vsub.s32 32, %v2249
        %v2251 = vshll.u32 %v2242, %v2249
        %v2252 = vshrl.u32 %v2234, %v2250
        %v2253 = vor.u32 %v2251, %v2252
        %v2254 = vsub.s32 4294967266, %v2249
        %v2255 = vadd.s32 %v2254, 127
        %v2256 = vshll.u32 %v2255, 23
        %v2257 = vor.u32 4788187, %v2256
        %v2258 = vand.u32 2147483647, %v2257
        %v2260 = vcvt.s32.f32 %v2253
        %v2261 = vmul.f32 %v2260, %v2258
        %v2262 = vxor.u32 %v2261, 2147483648
        %v2263 = vsel %vm2142, %v2262, %v2261
        %v2264 = vsub.s32 4, %v2240
        %v2265 = vsel %vm2142, %v2264, %v2240
        %v2266 = vsel %vm2141, %v1667, %v2263
        %v2267 = vsel %vm2141, 0, %v2265
        %v2268 = vmul.f32 %v2266, %v2266
        %v2269 = vmul.f32 %v2268, -0.001358992
        %v2270 = vadd.f32 %v2269, 0.041655596
        %v2271 = vmul.f32 %v2268, %v2270
        %v2272 = vadd.f32 %v2271, -0.4999988
        %v2273 = vmul.f32 %v2268, %v2272
        %v2274 = vadd.f32 1.0, %v2273
        %v2275 = vmul.f32 %v2266, %v2266
        %v2276 = vmul.f32 %v2275, -0.00019511016
        %v2277 = vadd.f32 %v2276, 0.008332121
        %v2278 = vmul.f32 %v2275, %v2277
        %v2279 = vadd.f32 %v2278, -0.16666654
        %v2280 = vmul.f32 %v2275, %v2279
        %v2281 = vadd.f32 %v2280, 1.0
        %v2282 = vmul.f32 %v2281, %v2266
        %vm2283 = vweird.f32 %v1667
        %v2284 = vadd.s32 %v2267, 3
        %v2285 = vand.u32 %v2284, 3
        %vm2286 = vcmp.lt.s32.totalorder %v2285, 2
        %vm2287 = vcmp.eq.s32.totalorder %v2285, 0
        %v2288 = vxor.u32 %v2282, 2147483648
        %v2289 = vsel %vm2287, %v2274, %v2288
        %vm2290 = vcmp.eq.s32.totalorder %v2285, 2
        %v2291 = vxor.u32 %v2274, 2147483648
        %v2292 = vsel %vm2290, %v2291, %v2282
        %v2293 = vsel %vm2286, %v2289, %v2292
        %v2294 = vsel %vm2283, nan, %v2293
        %v2295 = vand.u32 2147483647, %v1641
        %vm2296 = vcmp.le.f32.partialorder %v2295, 0.7853982
        %vm2297 = vcmp.lt.s32.totalorder %v1641, 0
        %v2298 = vand.u32 %v1641, 2139095040
        %v2299 = vshrl.u32 %v2298, 23
        %v2300 = vsub.s32 %v2299, 127
        %v2301 = vand.u32 2147483647, %v1641
        %v2302 = vand.u32 %v2301, 8388607
        %v2303 = vor.u32 %v2302, 8388608
        %v2304 = vsub.s32 0, %v2303
        %v2305 = vadd.s32 %v2300, 1
        %vm2306 = vcmp.gt.s32.totalorder %v2305, 0
        %v2307 = vsel %vm2306, %v2305, 0
        %v2308 = vshrl.u32 %v2307, 5
        %v2309 = vand.u32 %v2307, 31
        %v2310 = vsub.s32 32, %v2309
        %v2311 = vshrl.u32 683565275, %v2310
        %v2312 = vshll.u32 683565275, %v2309
        %v2313 = vshrl.u32 2475754826, %v2310
        %v2314 = vor.u32 %v2312, %v2313
        %v2315 = vshll.u32 2475754826, %v2309
        %v2316 = vshrl.u32 2131351028, %v2310
        %v2317 = vor.u32 %v2315, %v2316
        %v2318 = vshll.u32 2131351028, %v2309
        %v2319 = vshrl.u32 2102212464, %v2310
        %v2320 = vor.u32 %v2318, %v2319
        %v2321 = vshll.u32 2102212464, %v2309
        %v2322 = vshrl.u32 920167782, %v2310
        %v2323 = vor.u32 %v2321, %v2322
        %v2324 = vshll.u32 920167782, %v2309
        %v2325 = vshrl.u32 1326507024, %v2310
        %v2326 = vor.u32 %v2324, %v2325
        %vm2327 = vcmp.lt.s32.totalorder %v2308, 1
        %vm2328 = vcmp.lt.s32.totalorder %v2308, 2
        %vm2329 = vcmp.lt.s32.totalorder %v2308, 3
        %vm2330 = vcmp.lt.s32.totalorder %v2308, 4
        %v2331 = vsel %vm2327, %v2311, %v2314
        %v2332 = vsel %vm2330, %v2320, 2102212464
        %v2333 = vsel %vm2329, %v2317, %v2332
        %v2334 = vsel %vm2328, %v2331, %v2333
        %v2335 = vsel %vm2327, %v2314, %v2317
        %v2336 = vsel %vm2330, %v2323, 920167782
        %v2337 = vsel %vm2329, %v2320, %v2336
        %v2338 = vsel %vm2328, %v2335, %v2337
        %v2339 = vsel %vm2327, %v2317, %v2320
        %v2340 = vsel %vm2330, %v2326, 1326507024
        %v2341 = vsel %vm2329, %v2323, %v2340
        %v2342 = vsel %vm2328, %v2339, %v2341
        %v2343 = vshll.u32 %v2303, 8
        %v2344 = vand.u32 %v2343, 65535
        %v2345 = vshrl.u32 %v2343, 16
        %v2346 = vand.u32 %v2342, 65535
        %v2347 = vshrl.u32 %v2342, 16
        %v2348 = vmul.u32 %v2344, %v2346
        %v2349 = vmul.u32 %v2344, %v2347
        %v2350 = vmul.u32 %v2345, %v2346
        %v2351 = vmul.u32 %v2345, %v2347
        %v2352 = vshll.u32 %v2349, 16
        %v2353 = vshrl.u32 %v2349, 16
        %v2354 = vshll.u32 %v2350, 16
        %v2355 = vshrl.u32 %v2350, 16
        %vm2356 = vc.u32 %v2348, %v2352
        %v2357 = vsel %vm2356, 1, 0
        %v2358 = vadd.s32 %v2348, %v2352
        %v2359 = vadd.s32 %v2351, %v2357
        %vm2360 = vc.u32 %v2358, %v2354
        %v2361 = vsel %vm2360, 1, 0
        %v2362 = vadd.s32 %v2358, %v2354
        %v2363 = vadd.s32 %v2359, %v2361
        %v2364 = vadd.s32 %v2363, %v2353
        %v2365 = vadd.s32 %v2364, %v2355
        %v2366 = vand.u32 %v2343, 65535
        %v2367 = vshrl.u32 %v2343, 16
        %v2368 = vand.u32 %v2338, 65535
        %v2369 = vshrl.u32 %v2338, 16
        %v2370 = vmul.u32 %v2366, %v2368
        %v2371 = vmul.u32 %v2366, %v2369
        %v2372 = vmul.u32 %v2367, %v2368
        %v2373 = vmul.u32 %v2367, %v2369
        %v2374 = vshll.u32 %v2371, 16
        %v2375 = vshrl.u32 %v2371, 16
        %v2376 = vshll.u32 %v2372, 16
        %v2377 = vshrl.u32 %v2372, 16
        %vm2378 = vc.u32 %v2370, %v2374
        %v2379 = vsel %vm2378, 1, 0
        %v2380 = vadd.s32 %v2370, %v2374
        %v2381 = vadd.s32 %v2373, %v2379
        %vm2382 = vc.u32 %v2380, %v2376
        %v2383 = vsel %vm2382, 1, 0
        %v2384 = vadd.s32 %v2380, %v2376
        %v2385 = vadd.s32 %v2381, %v2383
        %v2386 = vadd.s32 %v2385, %v2375
        %v2387 = vadd.s32 %v2386, %v2377
        %v2388 = vmul.u32 %v2343, %v2334
        %v2389 = vadd.s32 %v2365, %v2384
        %vm2390 = vc.u32 %v2365, %v2384
        %v2391 = vadd.s32 %v2387, 1
        %v2392 = vsel %vm2390, %v2391, %v2387
        %v2393 = vadd.s32 %v2388, %v2392
        %v2394 = vadd.s32 %v2393, 536870912
        %v2395 = vshrl.u32 %v2394, 30
        %v2396 = vshll.u32 %v2395, 30
        %v2397 = vsub.s32 %v2393, %v2396
        %vm2398 = vcmp.lt.s32.totalorder %v2397, 0
        %v2399 = vsub.s32 0, %v2397
        %v2400 = vsel %vm2398, %v2399, %v2397
        %v2401 = vclz %v2400
        %v2402 = vsub.s32 %v2401, 2
        %vm2403 = vcmp.gt.s32.totalorder 0, %v2402
        %v2404 = vsel %vm2403, 0, %v2402
        %v2405 = vsub.s32 32, %v2404
        %v2406 = vshll.u32 %v2397, %v2404
        %v2407 = vshrl.u32 %v2389, %v2405
        %v2408 = vor.u32 %v2406, %v2407
        %v2409 = vsub.s32 4294967266, %v2404
        %v2410 = vadd.s32 %v2409, 127
        %v2411 = vshll.u32 %v2410, 23
        %v2412 = vor.u32 4788187, %v2411
        %v2413 = vand.u32 2147483647, %v2412
        %v2415 = vcvt.s32.f32 %v2408
        %v2416 = vmul.f32 %v2415, %v2413
        %v2417 = vxor.u32 %v2416, 2147483648
        %v2418 = vsel %vm2297, %v2417, %v2416
        %v2419 = vsub.s32 4, %v2395
        %v2420 = vsel %vm2297, %v2419, %v2395
        %v2421 = vsel %vm2296, %v1641, %v2418
        %v2422 = vsel %vm2296, 0, %v2420
        %v2423 = vmul.f32 %v2421, %v2421
        %v2424 = vmul.f32 %v2423, -0.001358992
        %v2425 = vadd.f32 %v2424, 0.041655596
        %v2426 = vmul.f32 %v2423, %v2425
        %v2427 = vadd.f32 %v2426, -0.4999988
        %v2428 = vmul.f32 %v2423, %v2427
        %v2429 = vadd.f32 1.0, %v2428
        %v2430 = vmul.f32 %v2421, %v2421
        %v2431 = vmul.f32 %v2430, -0.00019511016
        %v2432 = vadd.f32 %v2431, 0.008332121
        %v2433 = vmul.f32 %v2430, %v2432
        %v2434 = vadd.f32 %v2433, -0.16666654
        %v2435 = vmul.f32 %v2430, %v2434
        %v2436 = vadd.f32 %v2435, 1.0
        %v2437 = vmul.f32 %v2436, %v2421
        %vm2438 = vweird.f32 %v1641
        %v2439 = vadd.s32 %v2422, 3
        %v2440 = vand.u32 %v2439, 3
        %vm2441 = vcmp.lt.s32.totalorder %v2440, 2
        %vm2442 = vcmp.eq.s32.totalorder %v2440, 0
        %v2443 = vxor.u32 %v2437, 2147483648
        %v2444 = vsel %vm2442, %v2429, %v2443
        %vm2445 = vcmp.eq.s32.totalorder %v2440, 2
        %v2446 = vxor.u32 %v2429, 2147483648
        %v2447 = vsel %vm2445, %v2446, %v2437
        %v2448 = vsel %vm2441, %v2444, %v2447
        %v2449 = vsel %vm2438, nan, %v2448
        %v2450 = vand.u32 2147483647, %v1670
        %vm2451 = vcmp.le.f32.partialorder %v2450, 0.7853982
        %vm2452 = vcmp.lt.s32.totalorder %v1670, 0
        %v2453 = vand.u32 %v1670, 2139095040
        %v2454 = vshrl.u32 %v2453, 23
        %v2455 = vsub.s32 %v2454, 127
        %v2456 = vand.u32 2147483647, %v1670
        %v2457 = vand.u32 %v2456, 8388607
        %v2458 = vor.u32 %v2457, 8388608
        %v2459 = vsub.s32 0, %v2458
        %v2460 = vadd.s32 %v2455, 1
        %vm2461 = vcmp.gt.s32.totalorder %v2460, 0
        %v2462 = vsel %vm2461, %v2460, 0
        %v2463 = vshrl.u32 %v2462, 5
        %v2464 = vand.u32 %v2462, 31
        %v2465 = vsub.s32 32, %v2464
        %v2466 = vshrl.u32 683565275, %v2465
        %v2467 = vshll.u32 683565275, %v2464
        %v2468 = vshrl.u32 2475754826, %v2465
        %v2469 = vor.u32 %v2467, %v2468
        %v2470 = vshll.u32 2475754826, %v2464
        %v2471 = vshrl.u32 2131351028, %v2465
        %v2472 = vor.u32 %v2470, %v2471
        %v2473 = vshll.u32 2131351028, %v2464
        %v2474 = vshrl.u32 2102212464, %v2465
        %v2475 = vor.u32 %v2473, %v2474
        %v2476 = vshll.u32 2102212464, %v2464
        %v2477 = vshrl.u32 920167782, %v2465
        %v2478 = vor.u32 %v2476, %v2477
        %v2479 = vshll.u32 920167782, %v2464
        %v2480 = vshrl.u32 1326507024, %v2465
        %v2481 = vor.u32 %v2479, %v2480
        %vm2482 = vcmp.lt.s32.totalorder %v2463, 1
        %vm2483 = vcmp.lt.s32.totalorder %v2463, 2
        %vm2484 = vcmp.lt.s32.totalorder %v2463, 3
        %vm2485 = vcmp.lt.s32.totalorder %v2463, 4
        %v2486 = vsel %vm2482, %v2466, %v2469
        %v2487 = vsel %vm2485, %v2475, 2102212464
        %v2488 = vsel %vm2484, %v2472, %v2487
        %v2489 = vsel %vm2483, %v2486, %v2488
        %v2490 = vsel %vm2482, %v2469, %v2472
        %v2491 = vsel %vm2485, %v2478, 920167782
        %v2492 = vsel %vm2484, %v2475, %v2491
        %v2493 = vsel %vm2483, %v2490, %v2492
        %v2494 = vsel %vm2482, %v2472, %v2475
        %v2495 = vsel %vm2485, %v2481, 1326507024
        %v2496 = vsel %vm2484, %v2478, %v2495
        %v2497 = vsel %vm2483, %v2494, %v2496
        %v2498 = vshll.u32 %v2458, 8
        %v2499 = vand.u32 %v2498, 65535
        %v2500 = vshrl.u32 %v2498, 16
        %v2501 = vand.u32 %v2497, 65535
        %v2502 = vshrl.u32 %v2497, 16
        %v2503 = vmul.u32 %v2499, %v2501
        %v2504 = vmul.u32 %v2499, %v2502
        %v2505 = vmul.u32 %v2500, %v2501
        %v2506 = vmul.u32 %v2500, %v2502
        %v2507 = vshll.u32 %v2504, 16
        %v2508 = vshrl.u32 %v2504, 16
        %v2509 = vshll.u32 %v2505, 16
        %v2510 = vshrl.u32 %v2505, 16
        %vm2511 = vc.u32 %v2503, %v2507
        %v2512 = vsel %vm2511, 1, 0
        %v2513 = vadd.s32 %v2503, %v2507
        %v2514 = vadd.s32 %v2506, %v2512
        %vm2515 = vc.u32 %v2513, %v2509
        %v2516 = vsel %vm2515, 1, 0
        %v2517 = vadd.s32 %v2513, %v2509
        %v2518 = vadd.s32 %v2514, %v2516
        %v2519 = vadd.s32 %v2518, %v2508
        %v2520 = vadd.s32 %v2519, %v2510
        %v2521 = vand.u32 %v2498, 65535
        %v2522 = vshrl.u32 %v2498, 16
        %v2523 = vand.u32 %v2493, 65535
        %v2524 = vshrl.u32 %v2493, 16
        %v2525 = vmul.u32 %v2521, %v2523
        %v2526 = vmul.u32 %v2521, %v2524
        %v2527 = vmul.u32 %v2522, %v2523
        %v2528 = vmul.u32 %v2522, %v2524
        %v2529 = vshll.u32 %v2526, 16
        %v2530 = vshrl.u32 %v2526, 16
        %v2531 = vshll.u32 %v2527, 16
        %v2532 = vshrl.u32 %v2527, 16
        %vm2533 = vc.u32 %v2525, %v2529
        %v2534 = vsel %vm2533, 1, 0
        %v2535 = vadd.s32 %v2525, %v2529
        %v2536 = vadd.s32 %v2528, %v2534
        %vm2537 = vc.u32 %v2535, %v2531
        %v2538 = vsel %vm2537, 1, 0
        %v2539 = vadd.s32 %v2535, %v2531
        %v2540 = vadd.s32 %v2536, %v2538
        %v2541 = vadd.s32 %v2540, %v2530
        %v2542 = vadd.s32 %v2541, %v2532
        %v2543 = vmul.u32 %v2498, %v2489
        %v2544 = vadd.s32 %v2520, %v2539
        %vm2545 = vc.u32 %v2520, %v2539
        %v2546 = vadd.s32 %v2542, 1
        %v2547 = vsel %vm2545, %v2546, %v2542
        %v2548 = vadd.s32 %v2543, %v2547
        %v2549 = vadd.s32 %v2548, 536870912
        %v2550 = vshrl.u32 %v2549, 30
        %v2551 = vshll.u32 %v2550, 30
        %v2552 = vsub.s32 %v2548, %v2551
        %vm2553 = vcmp.lt.s32.totalorder %v2552, 0
        %v2554 = vsub.s32 0, %v2552
        %v2555 = vsel %vm2553, %v2554, %v2552
        %v2556 = vclz %v2555
        %v2557 = vsub.s32 %v2556, 2
        %vm2558 = vcmp.gt.s32.totalorder 0, %v2557
        %v2559 = vsel %vm2558, 0, %v2557
        %v2560 = vsub.s32 32, %v2559
        %v2561 = vshll.u32 %v2552, %v2559
        %v2562 = vshrl.u32 %v2544, %v2560
        %v2563 = vor.u32 %v2561, %v2562
        %v2564 = vsub.s32 4294967266, %v2559
        %v2565 = vadd.s32 %v2564, 127
        %v2566 = vshll.u32 %v2565, 23
        %v2567 = vor.u32 4788187, %v2566
        %v2568 = vand.u32 2147483647, %v2567
        %v2570 = vcvt.s32.f32 %v2563
        %v2571 = vmul.f32 %v2570, %v2568
        %v2572 = vxor.u32 %v2571, 2147483648
        %v2573 = vsel %vm2452, %v2572, %v2571
        %v2574 = vsub.s32 4, %v2550
        %v2575 = vsel %vm2452, %v2574, %v2550
        %v2576 = vsel %vm2451, %v1670, %v2573
        %v2577 = vsel %vm2451, 0, %v2575
        %v2578 = vmul.f32 %v2576, %v2576
        %v2579 = vmul.f32 %v2578, -0.001358992
        %v2580 = vadd.f32 %v2579, 0.041655596
        %v2581 = vmul.f32 %v2578, %v2580
        %v2582 = vadd.f32 %v2581, -0.4999988
        %v2583 = vmul.f32 %v2578, %v2582
        %v2584 = vadd.f32 1.0, %v2583
        %v2585 = vmul.f32 %v2576, %v2576
        %v2586 = vmul.f32 %v2585, -0.00019511016
        %v2587 = vadd.f32 %v2586, 0.008332121
        %v2588 = vmul.f32 %v2585, %v2587
        %v2589 = vadd.f32 %v2588, -0.16666654
        %v2590 = vmul.f32 %v2585, %v2589
        %v2591 = vadd.f32 %v2590, 1.0
        %v2592 = vmul.f32 %v2591, %v2576
        %vm2593 = vweird.f32 %v1670
        %v2594 = vadd.s32 %v2577, 3
        %v2595 = vand.u32 %v2594, 3
        %vm2596 = vcmp.lt.s32.totalorder %v2595, 2
        %vm2597 = vcmp.eq.s32.totalorder %v2595, 0
        %v2598 = vxor.u32 %v2592, 2147483648
        %v2599 = vsel %vm2597, %v2584, %v2598
        %vm2600 = vcmp.eq.s32.totalorder %v2595, 2
        %v2601 = vxor.u32 %v2584, 2147483648
        %v2602 = vsel %vm2600, %v2601, %v2592
        %v2603 = vsel %vm2596, %v2599, %v2602
        %v2604 = vsel %vm2593, nan, %v2603
        %v2605 = vand.u32 2147483647, %v1644
        %vm2606 = vcmp.le.f32.partialorder %v2605, 0.7853982
        %vm2607 = vcmp.lt.s32.totalorder %v1644, 0
        %v2608 = vand.u32 %v1644, 2139095040
        %v2609 = vshrl.u32 %v2608, 23
        %v2610 = vsub.s32 %v2609, 127
        %v2611 = vand.u32 2147483647, %v1644
        %v2612 = vand.u32 %v2611, 8388607
        %v2613 = vor.u32 %v2612, 8388608
        %v2614 = vsub.s32 0, %v2613
        %v2615 = vadd.s32 %v2610, 1
        %vm2616 = vcmp.gt.s32.totalorder %v2615, 0
        %v2617 = vsel %vm2616, %v2615, 0
        %v2618 = vshrl.u32 %v2617, 5
        %v2619 = vand.u32 %v2617, 31
        %v2620 = vsub.s32 32, %v2619
        %v2621 = vshrl.u32 683565275, %v2620
        %v2622 = vshll.u32 683565275, %v2619
        %v2623 = vshrl.u32 2475754826, %v2620
        %v2624 = vor.u32 %v2622, %v2623
        %v2625 = vshll.u32 2475754826, %v2619
        %v2626 = vshrl.u32 2131351028, %v2620
        %v2627 = vor.u32 %v2625, %v2626
        %v2628 = vshll.u32 2131351028, %v2619
        %v2629 = vshrl.u32 2102212464, %v2620
        %v2630 = vor.u32 %v2628, %v2629
        %v2631 = vshll.u32 2102212464, %v2619
        %v2632 = vshrl.u32 920167782, %v2620
        %v2633 = vor.u32 %v2631, %v2632
        %v2634 = vshll.u32 920167782, %v2619
        %v2635 = vshrl.u32 1326507024, %v2620
        %v2636 = vor.u32 %v2634, %v2635
        %vm2637 = vcmp.lt.s32.totalorder %v2618, 1
        %vm2638 = vcmp.lt.s32.totalorder %v2618, 2
        %vm2639 = vcmp.lt.s32.totalorder %v2618, 3
        %vm2640 = vcmp.lt.s32.totalorder %v2618, 4
        %v2641 = vsel %vm2637, %v2621, %v2624
        %v2642 = vsel %vm2640, %v2630, 2102212464
        %v2643 = vsel %vm2639, %v2627, %v2642
        %v2644 = vsel %vm2638, %v2641, %v2643
        %v2645 = vsel %vm2637, %v2624, %v2627
        %v2646 = vsel %vm2640, %v2633, 920167782
        %v2647 = vsel %vm2639, %v2630, %v2646
        %v2648 = vsel %vm2638, %v2645, %v2647
        %v2649 = vsel %vm2637, %v2627, %v2630
        %v2650 = vsel %vm2640, %v2636, 1326507024
        %v2651 = vsel %vm2639, %v2633, %v2650
        %v2652 = vsel %vm2638, %v2649, %v2651
        %v2653 = vshll.u32 %v2613, 8
        %v2654 = vand.u32 %v2653, 65535
        %v2655 = vshrl.u32 %v2653, 16
        %v2656 = vand.u32 %v2652, 65535
        %v2657 = vshrl.u32 %v2652, 16
        %v2658 = vmul.u32 %v2654, %v2656
        %v2659 = vmul.u32 %v2654, %v2657
        %v2660 = vmul.u32 %v2655, %v2656
        %v2661 = vmul.u32 %v2655, %v2657
        %v2662 = vshll.u32 %v2659, 16
        %v2663 = vshrl.u32 %v2659, 16
        %v2664 = vshll.u32 %v2660, 16
        %v2665 = vshrl.u32 %v2660, 16
        %vm2666 = vc.u32 %v2658, %v2662
        %v2667 = vsel %vm2666, 1, 0
        %v2668 = vadd.s32 %v2658, %v2662
        %v2669 = vadd.s32 %v2661, %v2667
        %vm2670 = vc.u32 %v2668, %v2664
        %v2671 = vsel %vm2670, 1, 0
        %v2672 = vadd.s32 %v2668, %v2664
        %v2673 = vadd.s32 %v2669, %v2671
        %v2674 = vadd.s32 %v2673, %v2663
        %v2675 = vadd.s32 %v2674, %v2665
        %v2676 = vand.u32 %v2653, 65535
        %v2677 = vshrl.u32 %v2653, 16
        %v2678 = vand.u32 %v2648, 65535
        %v2679 = vshrl.u32 %v2648, 16
        %v2680 = vmul.u32 %v2676, %v2678
        %v2681 = vmul.u32 %v2676, %v2679
        %v2682 = vmul.u32 %v2677, %v2678
        %v2683 = vmul.u32 %v2677, %v2679
        %v2684 = vshll.u32 %v2681, 16
        %v2685 = vshrl.u32 %v2681, 16
        %v2686 = vshll.u32 %v2682, 16
        %v2687 = vshrl.u32 %v2682, 16
        %vm2688 = vc.u32 %v2680, %v2684
        %v2689 = vsel %vm2688, 1, 0
        %v2690 = vadd.s32 %v2680, %v2684
        %v2691 = vadd.s32 %v2683, %v2689
        %vm2692 = vc.u32 %v2690, %v2686
        %v2693 = vsel %vm2692, 1, 0
        %v2694 = vadd.s32 %v2690, %v2686
        %v2695 = vadd.s32 %v2691, %v2693
        %v2696 = vadd.s32 %v2695, %v2685
        %v2697 = vadd.s32 %v2696, %v2687
        %v2698 = vmul.u32 %v2653, %v2644
        %v2699 = vadd.s32 %v2675, %v2694
        %vm2700 = vc.u32 %v2675, %v2694
        %v2701 = vadd.s32 %v2697, 1
        %v2702 = vsel %vm2700, %v2701, %v2697
        %v2703 = vadd.s32 %v2698, %v2702
        %v2704 = vadd.s32 %v2703, 536870912
        %v2705 = vshrl.u32 %v2704, 30
        %v2706 = vshll.u32 %v2705, 30
        %v2707 = vsub.s32 %v2703, %v2706
        %vm2708 = vcmp.lt.s32.totalorder %v2707, 0
        %v2709 = vsub.s32 0, %v2707
        %v2710 = vsel %vm2708, %v2709, %v2707
        %v2711 = vclz %v2710
        %v2712 = vsub.s32 %v2711, 2
        %vm2713 = vcmp.gt.s32.totalorder 0, %v2712
        %v2714 = vsel %vm2713, 0, %v2712
        %v2715 = vsub.s32 32, %v2714
        %v2716 = vshll.u32 %v2707, %v2714
        %v2717 = vshrl.u32 %v2699, %v2715
        %v2718 = vor.u32 %v2716, %v2717
        %v2719 = vsub.s32 4294967266, %v2714
        %v2720 = vadd.s32 %v2719, 127
        %v2721 = vshll.u32 %v2720, 23
        %v2722 = vor.u32 4788187, %v2721
        %v2723 = vand.u32 2147483647, %v2722
        %v2725 = vcvt.s32.f32 %v2718
        %v2726 = vmul.f32 %v2725, %v2723
        %v2727 = vxor.u32 %v2726, 2147483648
        %v2728 = vsel %vm2607, %v2727, %v2726
        %v2729 = vsub.s32 4, %v2705
        %v2730 = vsel %vm2607, %v2729, %v2705
        %v2731 = vsel %vm2606, %v1644, %v2728
        %v2732 = vsel %vm2606, 0, %v2730
        %v2733 = vmul.f32 %v2731, %v2731
        %v2734 = vmul.f32 %v2733, -0.001358992
        %v2735 = vadd.f32 %v2734, 0.041655596
        %v2736 = vmul.f32 %v2733, %v2735
        %v2737 = vadd.f32 %v2736, -0.4999988
        %v2738 = vmul.f32 %v2733, %v2737
        %v2739 = vadd.f32 1.0, %v2738
        %v2740 = vmul.f32 %v2731, %v2731
        %v2741 = vmul.f32 %v2740, -0.00019511016
        %v2742 = vadd.f32 %v2741, 0.008332121
        %v2743 = vmul.f32 %v2740, %v2742
        %v2744 = vadd.f32 %v2743, -0.16666654
        %v2745 = vmul.f32 %v2740, %v2744
        %v2746 = vadd.f32 %v2745, 1.0
        %v2747 = vmul.f32 %v2746, %v2731
        %vm2748 = vweird.f32 %v1644
        %v2749 = vadd.s32 %v2732, 3
        %v2750 = vand.u32 %v2749, 3
        %vm2751 = vcmp.lt.s32.totalorder %v2750, 2
        %vm2752 = vcmp.eq.s32.totalorder %v2750, 0
        %v2753 = vxor.u32 %v2747, 2147483648
        %v2754 = vsel %vm2752, %v2739, %v2753
        %vm2755 = vcmp.eq.s32.totalorder %v2750, 2
        %v2756 = vxor.u32 %v2739, 2147483648
        %v2757 = vsel %vm2755, %v2756, %v2747
        %v2758 = vsel %vm2751, %v2754, %v2757
        %v2759 = vsel %vm2748, nan, %v2758
        %v2760 = vand.u32 2147483647, %v1673
        %vm2761 = vcmp.le.f32.partialorder %v2760, 0.7853982
        %vm2762 = vcmp.lt.s32.totalorder %v1673, 0
        %v2763 = vand.u32 %v1673, 2139095040
        %v2764 = vshrl.u32 %v2763, 23
        %v2765 = vsub.s32 %v2764, 127
        %v2766 = vand.u32 2147483647, %v1673
        %v2767 = vand.u32 %v2766, 8388607
        %v2768 = vor.u32 %v2767, 8388608
        %v2769 = vsub.s32 0, %v2768
        %v2770 = vadd.s32 %v2765, 1
        %vm2771 = vcmp.gt.s32.totalorder %v2770, 0
        %v2772 = vsel %vm2771, %v2770, 0
        %v2773 = vshrl.u32 %v2772, 5
        %v2774 = vand.u32 %v2772, 31
        %v2775 = vsub.s32 32, %v2774
        %v2776 = vshrl.u32 683565275, %v2775
        %v2777 = vshll.u32 683565275, %v2774
        %v2778 = vshrl.u32 2475754826, %v2775
        %v2779 = vor.u32 %v2777, %v2778
        %v2780 = vshll.u32 2475754826, %v2774
        %v2781 = vshrl.u32 2131351028, %v2775
        %v2782 = vor.u32 %v2780, %v2781
        %v2783 = vshll.u32 2131351028, %v2774
        %v2784 = vshrl.u32 2102212464, %v2775
        %v2785 = vor.u32 %v2783, %v2784
        %v2786 = vshll.u32 2102212464, %v2774
        %v2787 = vshrl.u32 920167782, %v2775
        %v2788 = vor.u32 %v2786, %v2787
        %v2789 = vshll.u32 920167782, %v2774
        %v2790 = vshrl.u32 1326507024, %v2775
        %v2791 = vor.u32 %v2789, %v2790
        %vm2792 = vcmp.lt.s32.totalorder %v2773, 1
        %vm2793 = vcmp.lt.s32.totalorder %v2773, 2
        %vm2794 = vcmp.lt.s32.totalorder %v2773, 3
        %vm2795 = vcmp.lt.s32.totalorder %v2773, 4
        %v2796 = vsel %vm2792, %v2776, %v2779
        %v2797 = vsel %vm2795, %v2785, 2102212464
        %v2798 = vsel %vm2794, %v2782, %v2797
        %v2799 = vsel %vm2793, %v2796, %v2798
        %v2800 = vsel %vm2792, %v2779, %v2782
        %v2801 = vsel %vm2795, %v2788, 920167782
        %v2802 = vsel %vm2794, %v2785, %v2801
        %v2803 = vsel %vm2793, %v2800, %v2802
        %v2804 = vsel %vm2792, %v2782, %v2785
        %v2805 = vsel %vm2795, %v2791, 1326507024
        %v2806 = vsel %vm2794, %v2788, %v2805
        %v2807 = vsel %vm2793, %v2804, %v2806
        %v2808 = vshll.u32 %v2768, 8
        %v2809 = vand.u32 %v2808, 65535
        %v2810 = vshrl.u32 %v2808, 16
        %v2811 = vand.u32 %v2807, 65535
        %v2812 = vshrl.u32 %v2807, 16
        %v2813 = vmul.u32 %v2809, %v2811
        %v2814 = vmul.u32 %v2809, %v2812
        %v2815 = vmul.u32 %v2810, %v2811
        %v2816 = vmul.u32 %v2810, %v2812
        %v2817 = vshll.u32 %v2814, 16
        %v2818 = vshrl.u32 %v2814, 16
        %v2819 = vshll.u32 %v2815, 16
        %v2820 = vshrl.u32 %v2815, 16
        %vm2821 = vc.u32 %v2813, %v2817
        %v2822 = vsel %vm2821, 1, 0
        %v2823 = vadd.s32 %v2813, %v2817
        %v2824 = vadd.s32 %v2816, %v2822
        %vm2825 = vc.u32 %v2823, %v2819
        %v2826 = vsel %vm2825, 1, 0
        %v2827 = vadd.s32 %v2823, %v2819
        %v2828 = vadd.s32 %v2824, %v2826
        %v2829 = vadd.s32 %v2828, %v2818
        %v2830 = vadd.s32 %v2829, %v2820
        %v2831 = vand.u32 %v2808, 65535
        %v2832 = vshrl.u32 %v2808, 16
        %v2833 = vand.u32 %v2803, 65535
        %v2834 = vshrl.u32 %v2803, 16
        %v2835 = vmul.u32 %v2831, %v2833
        %v2836 = vmul.u32 %v2831, %v2834
        %v2837 = vmul.u32 %v2832, %v2833
        %v2838 = vmul.u32 %v2832, %v2834
        %v2839 = vshll.u32 %v2836, 16
        %v2840 = vshrl.u32 %v2836, 16
        %v2841 = vshll.u32 %v2837, 16
        %v2842 = vshrl.u32 %v2837, 16
        %vm2843 = vc.u32 %v2835, %v2839
        %v2844 = vsel %vm2843, 1, 0
        %v2845 = vadd.s32 %v2835, %v2839
        %v2846 = vadd.s32 %v2838, %v2844
        %vm2847 = vc.u32 %v2845, %v2841
        %v2848 = vsel %vm2847, 1, 0
        %v2849 = vadd.s32 %v2845, %v2841
        %v2850 = vadd.s32 %v2846, %v2848
        %v2851 = vadd.s32 %v2850, %v2840
        %v2852 = vadd.s32 %v2851, %v2842
        %v2853 = vmul.u32 %v2808, %v2799
        %v2854 = vadd.s32 %v2830, %v2849
        %vm2855 = vc.u32 %v2830, %v2849
        %v2856 = vadd.s32 %v2852, 1
        %v2857 = vsel %vm2855, %v2856, %v2852
        %v2858 = vadd.s32 %v2853, %v2857
        %v2859 = vadd.s32 %v2858, 536870912
        %v2860 = vshrl.u32 %v2859, 30
        %v2861 = vshll.u32 %v2860, 30
        %v2862 = vsub.s32 %v2858, %v2861
        %vm2863 = vcmp.lt.s32.totalorder %v2862, 0
        %v2864 = vsub.s32 0, %v2862
        %v2865 = vsel %vm2863, %v2864, %v2862
        %v2866 = vclz %v2865
        %v2867 = vsub.s32 %v2866, 2
        %vm2868 = vcmp.gt.s32.totalorder 0, %v2867
        %v2869 = vsel %vm2868, 0, %v2867
        %v2870 = vsub.s32 32, %v2869
        %v2871 = vshll.u32 %v2862, %v2869
        %v2872 = vshrl.u32 %v2854, %v2870
        %v2873 = vor.u32 %v2871, %v2872
        %v2874 = vsub.s32 4294967266, %v2869
        %v2875 = vadd.s32 %v2874, 127
        %v2876 = vshll.u32 %v2875, 23
        %v2877 = vor.u32 4788187, %v2876
        %v2878 = vand.u32 2147483647, %v2877
        %v2880 = vcvt.s32.f32 %v2873
        %v2881 = vmul.f32 %v2880, %v2878
        %v2882 = vxor.u32 %v2881, 2147483648
        %v2883 = vsel %vm2762, %v2882, %v2881
        %v2884 = vsub.s32 4, %v2860
        %v2885 = vsel %vm2762, %v2884, %v2860
        %v2886 = vsel %vm2761, %v1673, %v2883
        %v2887 = vsel %vm2761, 0, %v2885
        %v2888 = vmul.f32 %v2886, %v2886
        %v2889 = vmul.f32 %v2888, -0.001358992
        %v2890 = vadd.f32 %v2889, 0.041655596
        %v2891 = vmul.f32 %v2888, %v2890
        %v2892 = vadd.f32 %v2891, -0.4999988
        %v2893 = vmul.f32 %v2888, %v2892
        %v2894 = vadd.f32 1.0, %v2893
        %v2895 = vmul.f32 %v2886, %v2886
        %v2896 = vmul.f32 %v2895, -0.00019511016
        %v2897 = vadd.f32 %v2896, 0.008332121
        %v2898 = vmul.f32 %v2895, %v2897
        %v2899 = vadd.f32 %v2898, -0.16666654
        %v2900 = vmul.f32 %v2895, %v2899
        %v2901 = vadd.f32 %v2900, 1.0
        %v2902 = vmul.f32 %v2901, %v2886
        %vm2903 = vweird.f32 %v1673
        %v2904 = vadd.s32 %v2887, 3
        %v2905 = vand.u32 %v2904, 3
        %vm2906 = vcmp.lt.s32.totalorder %v2905, 2
        %vm2907 = vcmp.eq.s32.totalorder %v2905, 0
        %v2908 = vxor.u32 %v2902, 2147483648
        %v2909 = vsel %vm2907, %v2894, %v2908
        %vm2910 = vcmp.eq.s32.totalorder %v2905, 2
        %v2911 = vxor.u32 %v2894, 2147483648
        %v2912 = vsel %vm2910, %v2911, %v2902
        %v2913 = vsel %vm2906, %v2909, %v2912
        %v2914 = vsel %vm2903, nan, %v2913
        %v2915 = vld [vmem:[%s3] sm:$0xff]
        %v2916 = vld [vmem:[%s3 + $0x8] sm:$0xff]
        %v2917 = vld [vmem:[%s3 + $0x10] sm:$0xff]
        %v2918 = vld [vmem:[%s3 + $0x18] sm:$0xff]
        %2920 = vset.pattern.permute.xlu0 0
        %2921 = vperm.xlu0 %2920, %v2915
        %v2922 = vpop.permute.xlu0 %2921
        %2925 = vset.pattern.permute.xlu0 0
        %2926 = vperm.xlu0 %2925, %v2916
        %v2927 = vpop.permute.xlu0 %2926
        %2930 = vset.pattern.permute.xlu0 0
        %2931 = vperm.xlu0 %2930, %v2917
        %v2932 = vpop.permute.xlu0 %2931
        %2935 = vset.pattern.permute.xlu0 0
        %2936 = vperm.xlu0 %2935, %v2918
        %v2937 = vpop.permute.xlu0 %2936
        %v2939 = vmul.f32 %v2922, %v1829
        %v2940 = vmul.f32 %v2922, %v1984
        %v2941 = vmul.f32 %v2927, %v2139
        %v2942 = vmul.f32 %v2927, %v2294
        %v2943 = vmul.f32 %v2932, %v2449
        %v2944 = vmul.f32 %v2932, %v2604
        %v2945 = vmul.f32 %v2937, %v2759
        %v2946 = vmul.f32 %v2937, %v2914
        %v2947 = vadd.f32 %v2939, %v2941
        %v2948 = vadd.f32 %v2947, %v2943
        %v2949 = vadd.f32 %v2948, %v2945
        %v2950 = vrot.slane %v2949, 4
        %v2951 = vadd.f32 %v2949, %v2950
        %v2952 = vrot.slane %v2951, 2
        %v2953 = vadd.f32 %v2951, %v2952
        %v2954 = vrot.slane %v2953, 1
        %v2955 = vadd.f32 %v2953, %v2954
        %v2956 = vadd.f32 %v2940, %v2942
        %v2957 = vadd.f32 %v2956, %v2944
        %v2958 = vadd.f32 %v2957, %v2946
        %v2959 = vrot.slane %v2958, 4
        %v2960 = vadd.f32 %v2958, %v2959
        %v2961 = vrot.slane %v2960, 2
        %v2962 = vadd.f32 %v2960, %v2961
        %v2963 = vrot.slane %v2962, 1
        %v2964 = vadd.f32 %v2962, %v2963
        %v2965 = vld [vmem:[%s4 + $0x40] sm:$0x1]
        %2967 = vset.pattern.permute.xlu0 0
        %2968 = vperm.xlu0 %2967, %v2965
        %v2969 = vpop.permute.xlu0 %2968
        %v2971 = vadd.f32 %v2955, %v2969
        %v2972 = vadd.f32 %v2964, %v2969
        %v2975 = vrot.slane %v2972, 7
        %vm2976 = vcmask 1040384
        %v2977 = vsel %vm2976, %v2971, %v2975
        %v2979 = vlaneseq
        %vm2980 = vcmp.ge.s32.totalorder %v2979, 0
        %vm2981 = vcmp.lt.s32.totalorder %v2979, 256
        %vm2982 = vmand %vm2980, %vm2981
        %2983 = vst.msk [vmem:[%s218] sm:$0x3] %vm2982, %v2977
        %s2984 = sand.u32 %s137, 1
        %s2985 = scalar_lea.sflag [#allocation3], %s2984
        %s2986 = sand.u32 %s137, 1
        %s2987 = smul.addr %s2986, 2
        %s2988 = scalar_lea.vmem [#allocation2], %s2987
        // Predicated region
        $region41: #{tpu_custom_call.1} parent=39 // pred_check
          %p2989 = pneg %p147
        $region42: #{tpu_custom_call.1} parent=39 // pred_check_branch
          %2991 = sbr.rel (%p2989) target = $region44
        $region43: #{tpu_custom_call.1} parent=39 // pred_region
          %s2992 = smul.u32 2, %s19
          %2994 = vsyncadd %s2985, 0
          %s2995 = scalar_lea.hbm %s5, %s2992
          %s2997 = sshll.u32 %s2988, 4
          %s2998 = int_to_ptr.vmem [resolvable:$true] %s2997
          %s2999 = sshll.u32 %s2995, 4
          %s3000 = int_to_ptr.hbm [resolvable:$true] %s2999
          %3002 = dma.vmem_to_hbm [thread:$0]  %s2998, 32, %s3000, %s2985
        $region44: #{tpu_custom_call.1} parent=39 // pred_fallthru
          _
      $region40: #{tpu_custom_call.1} parent=5 // pred_fallthru
        _
      %p3003 = scmp.le.s32.totalorder 2, %s14
      // Predicated region
      $region45: #{tpu_custom_call.1} parent=5 // pred_check
        %p3004 = pneg %p3003
      $region46: #{tpu_custom_call.1} parent=5 // pred_check_branch
        %3006 = sbr.rel (%p3004) target = $region48
      $region47: #{tpu_custom_call.1} parent=5 // pred_region
        %s3007 = ssub.s32 %s14, 2
        // Predicated region
        $region49: #{tpu_custom_call.1} parent=47 // pred_check
          %p3008 = pneg %p153
        $region50: #{tpu_custom_call.1} parent=47 // pred_check_branch
          %3010 = sbr.rel (%p3008) target = $region52
        $region51: #{tpu_custom_call.1} parent=47 // pred_region
          %s3011 = sand.u32 %s138, 1
          %s3012 = scalar_lea.sflag [#allocation3], %s3011
          %s3013 = sand.u32 %s138, 1
          %s3014 = smul.addr %s3013, 2
          %s3015 = scalar_lea.vmem [#allocation2], %s3014
          %3017 = dma.done %s3012, 32
        $region52: #{tpu_custom_call.1} parent=47 // pred_fallthru
          _
      $region48: #{tpu_custom_call.1} parent=5 // pred_fallthru
        _
    $region6: #{tpu_custom_call.1} parent=1 // loop_footer
      %s18 = sadd.s32 1, %s14
    $region7: #{tpu_custom_call.1} parent=1 // loop_footer_branch
      %13 = sbr.rel target = $region3
    $region8: #{tpu_custom_call.1} parent=1 // loop_exit
      _
    %3018 = vsyncpa [#allocation3], 1
    %s3019 = scalar_lea.sflag [#allocation3], 1
    %3020 = vsyncpa %s3019, 1

</llo_original>
